<compile_context>
chip_gen: v7x
topology: tpu7x:2x2x1
jax: 0.10.0
libtpu: 0.0.40
codegen_flags: <defaults>
</compile_context>

<pallas_src>
import math

import jax
import jax.numpy as jnp
from jax.experimental import pallas as pl
from jax.experimental.pallas import tpu as pltpu

EPS = 1e-5  # PyTorch LayerNorm / F.layer_norm default eps


def _layernorm(v, gamma, beta):
    mean = jnp.mean(v, axis=-1, keepdims=True)
    cen = v - mean
    var = jnp.mean(cen * cen, axis=-1, keepdims=True)
    return cen * jax.lax.rsqrt(var + EPS) * gamma + beta


def _layernorm_noaffine(v):
    mean = jnp.mean(v, axis=-1, keepdims=True)
    cen = v - mean
    var = jnp.mean(cen * cen, axis=-1, keepdims=True)
    return cen * jax.lax.rsqrt(var + EPS)


def _const_spec(shape):
    nd = len(shape)
    return pl.BlockSpec(shape, lambda i, _nd=nd: (0,) * _nd)


def _pick_bb(b, k, row_target):
    """Batch elements per grid step: largest divisor of b whose row block
    (bb*k) is sublane-dense (multiple of 8, or the full batch) and fits the
    per-step row target.  No forced multi-step split: on single-TC chips the
    grid is a serial loop and splitting a tiny problem only adds ~0.35us of
    per-step overhead; for large batches row_target still yields >=2 big
    'parallel' steps for v7x's dual TensorCores."""
    cands = [d for d in range(1, b + 1)
             if b % d == 0 and ((d * k) % 8 == 0 or d == b)]
    target_rows = max(row_target, k)
    under = [d for d in cands if d * k <= target_rows]
    return max(under) if under else min(cands)


def recurrent_layer_forward(x, state, params, k, *, use_bf16_matmul=False,
                            bf16_wox_matmul=False, row_target=1024):
    """x: [B*K, M] f32, state: [B*K, H] f32 -> (out_x, out_state), each [B*K, H].

    Rows must be batch-major (all K objects of a batch element contiguous),
    matching the PyTorch reference's .view(b, k, .)."""
    bk, m = x.shape
    h = state.shape[1]
    assert k > 1 and bk % k == 0
    b = bk // k

    (we, be, ge, bge, wcf, wcc, bc, gc, bgc, wx, bx, gx, bgx,
     wa1, ba1, ga1, bga1, wa2, ba2, wos, woe, wox, bo) = params
    a = wa1.shape[1]

    # ---- wrapper-side weight fusion / bias packing (layout plumbing only) --
    w_s1 = jnp.concatenate([wcf, wcc, wos], axis=1)            # [H, 3H]
    w_xa = jnp.concatenate([wx, wa1], axis=1)                  # [H, H+A]
    hvec = jnp.concatenate([be, ge, bge, bc, gc, bgc, bx, gx, bgx, bo],
                           axis=0)                             # [10, H]
    avec = jnp.concatenate([ba1, ga1, bga1, wa2], axis=0)      # [4, A]
    ba2s = ba2.reshape(1, 1)

    if use_bf16_matmul:
        we, w_s1, w_xa, woe, wox = (p.astype(jnp.bfloat16)
                                    for p in (we, w_s1, w_xa, woe, wox))
    elif bf16_wox_matmul:
        # v5e: only the deep (M) contraction is worth quantising
        wox = wox.astype(jnp.bfloat16)

    bb = _pick_bb(b, k, row_target)
    rows = bb * k                      # rows handled per grid step

    def kernel(x_ref, s_ref, we_ref, ws1_ref, wxa_ref, woe_ref, wox_ref,
               hvec_ref, avec_ref, ba2_ref, out_ref):

        def mm(lhs, w_ref):
            w = w_ref[...]
            return jnp.dot(lhs.astype(w.dtype), w,
                           preferred_element_type=jnp.float32)

        hv = hvec_ref[...]                       # [10, H] f32
        be_, ge_, bge_ = hv[0:1], hv[1:2], hv[2:3]
        bc_, gc_, bgc_ = hv[3:4], hv[4:5], hv[5:6]
        bx_, gx_, bgx_ = hv[6:7], hv[7:8], hv[8:9]
        bo_ = hv[9:10]
        av = avec_ref[...]                       # [4, A] f32
        ba1_, ga1_, bga1_, wa2_ = av[0:1], av[1:2], av[2:3], av[3:4]
        ba2_ = ba2_ref[...]                      # [1, 1]

        # object index within each K-row group, generated in-kernel
        row_idx = jax.lax.broadcasted_iota(jnp.int32, (rows, 1), 0)
        if (k & (k - 1)) == 0:
            oi = row_idx & (k - 1)
        else:
            oi = row_idx % k

        # --- 0. encoder -----------------------------------------------------
        state1 = jnp.maximum(
            _layernorm(mm(s_ref[...], we_ref) + be_, ge_, bge_), 0.0)  # [rows,H]

        # --- 1. fused state1 @ [wcf | wcc | wos]  (one MXU op) ---------------
        y = mm(state1, ws1_ref)                  # [rows, 3H]
        af = y[:, :h]                            # focus contribution
        ac = y[:, h:2 * h]                       # context contribution
        s1o = y[:, 2 * h:]                       # state1 @ wos (out_fc term)
        af_bc = af + bc_                         # hoisted out of the shift loop

        # --- 2. K-1 grouped shifts, stacked into one sublane-dense slab ------
        # partner of object i at shift s is object (i+s) mod k; the shifted
        # context rows are two static XLU rolls + a select (wrapped rows are
        # garbage but always discarded by the select).
        parts = []
        for s in range(1, k):
            up = pltpu.roll(ac, rows - s, axis=0)     # ac[(r+s)   mod rows]
            down = pltpu.roll(ac, k - s, axis=0)      # ac[(r+s-k) mod rows]
            ac_s = jnp.where(oi < (k - s), up, down)
            parts.append(af_bc + ac_s)
        core_in = jnp.concatenate(parts, axis=0)      # [(k-1)*rows, H]

        core = jnp.maximum(_layernorm(core_in, gc_, bgc_), 0.0)

        # --- 3. one fused matmul for context + attention hidden --------------
        z = mm(core, wxa_ref)                         # [(k-1)*rows, H+A]
        ctx = jnp.maximum(_layernorm(z[:, :h] + bx_, gx_, bgx_), 0.0)
        ath = jnp.tanh(_layernorm(z[:, h:] + ba1_, ga1_, bga1_))
        # attention output layer (A -> 1) on the VPU: multiply + lane reduce
        att = jax.nn.sigmoid(
            jnp.sum(ath * wa2_, axis=-1, keepdims=True) + ba2_)
        weighted = ctx * att                          # [(k-1)*rows, H]

        effect = weighted[0:rows]
        for s in range(1, k - 1):
            effect = effect + weighted[s * rows:(s + 1) * rows]

        # --- 4. out_fc over concat([state1, effect, x]) ----------------------
        new_state = s1o + mm(effect, woe_ref) + mm(x_ref[...], wox_ref) + bo_

        # --- 5. RecurrentLayer epilogue; one packed [rows, 2H] store ----------
        out_x = jax.nn.sigmoid(_layernorm_noaffine(new_state))
        out_s = jax.nn.sigmoid(new_state)
        out_ref[...] = jnp.concatenate([out_x, out_s], axis=-1)

    in_specs = [
        pl.BlockSpec((rows, m), lambda i: (i, 0)),    # x
        pl.BlockSpec((rows, h), lambda i: (i, 0)),    # state
        _const_spec(we.shape), _const_spec(w_s1.shape), _const_spec(w_xa.shape),
        _const_spec(woe.shape), _const_spec(wox.shape),
        _const_spec(hvec.shape), _const_spec(avec.shape), _const_spec(ba2s.shape),
    ]
    out_spec = pl.BlockSpec((rows, 2 * h), lambda i: (i, 0))
    out_shape = jax.ShapeDtypeStruct((bk, 2 * h), jnp.float32)

    inputs = (x, state, we, w_s1, w_xa, woe, wox, hvec, avec, ba2s)

    flops = 2 * bk * (h * h + 3 * h * h + (k - 1) * h * (h + a) + h * h + m * h)
    transcendentals = bk * ((k - 1) * (a + h + 1) + 2 * h)
    bytes_accessed = (4 * (x.size + state.size + bk * 2 * h)
                      + sum(int(p.size) * p.dtype.itemsize for p in inputs[2:]))

    packed = pl.pallas_call(
        kernel,
        grid=(b // bb,),
        in_specs=in_specs,
        out_specs=out_spec,
        out_shape=out_shape,
        compiler_params=pltpu.CompilerParams(
            dimension_semantics=("parallel",)),
        cost_estimate=pl.CostEstimate(
            flops=int(flops),
            transcendentals=int(transcendentals),
            bytes_accessed=int(bytes_accessed)),
    )(*inputs)

    # split the packed [B*K, 2H] slab back into (out_x, out_state)
    return packed[:, :h], packed[:, h:]


def init_params(key, h, a, m):
    """Deterministic synthetic params; Linear weights stored transposed as
    [in, out].  The attention output weight wa2 is stored as a [1, a] row
    vector (applied on the VPU)."""
    def linear(key, fan_in, fan_out):
        kw, kb = jax.random.split(key)
        bound = 1.0 / math.sqrt(fan_in)
        w = jax.random.uniform(kw, (fan_in, fan_out), jnp.float32, -bound, bound)
        bias = jax.random.uniform(kb, (1, fan_out), jnp.float32, -bound, bound)
        return w, bias

    keys = jax.random.split(key, 6)

    we, be = linear(keys[0], h, h)                     # encoder
    ge, bge = jnp.ones((1, h), jnp.float32), jnp.zeros((1, h), jnp.float32)

    wc, bc = linear(keys[1], 2 * h, h)                 # core ([focus, context])
    wcf, wcc = wc[:h], wc[h:]
    gc, bgc = jnp.ones((1, h), jnp.float32), jnp.zeros((1, h), jnp.float32)

    wx, bx = linear(keys[2], h, h)                     # context net
    gx, bgx = jnp.ones((1, h), jnp.float32), jnp.zeros((1, h), jnp.float32)

    wa1, ba1 = linear(keys[3], h, a)                   # attention hidden
    ga1, bga1 = jnp.ones((1, a), jnp.float32), jnp.zeros((1, a), jnp.float32)
    wa2c, ba2 = linear(keys[4], a, 1)                  # attention out (A -> 1)
    wa2 = wa2c.reshape(1, a)

    wo, bo = linear(keys[5], 2 * h + m, h)             # out_fc [state1,effect,x]
    wos, woe, wox = wo[:h], wo[h:2 * h], wo[2 * h:]

    return (we, be, ge, bge,
            wcf, wcc, bc, gc, bgc,
            wx, bx, gx, bgx,
            wa1, ba1, ga1, bga1,
            wa2, ba2,
            wos, woe, wox, bo)


def reference_forward(x, state, params, k):
    """Pure-JAX port of the PyTorch RecurrentLayer forward (f32, HIGHEST prec)."""
    (we, be, ge, bge, wcf, wcc, bc, gc, bgc, wx, bx, gx, bgx,
     wa1, ba1, ga1, bga1, wa2, ba2, wos, woe, wox, bo) = params
    dot = lambda a, w: jnp.dot(a, w, precision=jax.lax.Precision.HIGHEST)
    bk, _ = x.shape
    b = bk // k
    h = state.shape[1]

    state1 = jnp.maximum(_layernorm(dot(state, we) + be, ge, bge), 0.0)
    s1r = state1.reshape(b, k, h)
    fs = jnp.broadcast_to(s1r[:, :, None, :], (b, k, k - 1, h))
    cs = jnp.stack([jnp.stack([s1r[:, j] for j in range(k) if j != i], axis=1)
                    for i in range(k)], axis=1)
    fsr = fs.reshape(b * k * (k - 1), h)
    csr = cs.reshape(b * k * (k - 1), h)
    core = jnp.maximum(_layernorm(dot(fsr, wcf) + dot(csr, wcc) + bc, gc, bgc), 0.0)
    ctx = jnp.maximum(_layernorm(dot(core, wx) + bx, gx, bgx), 0.0)
    ath = jnp.tanh(_layernorm(dot(core, wa1) + ba1, ga1, bga1))
    att = jax.nn.sigmoid(dot(ath, wa2.T) + ba2)
    effect = jnp.sum(ctx.reshape(b * k, k - 1, h) * att.reshape(b * k, k - 1, 1),
                     axis=1)
    new_state = dot(state1, wos) + dot(effect, woe) + dot(x, wox) + bo
    return (jax.nn.sigmoid(_layernorm_noaffine(new_state)),
            jax.nn.sigmoid(new_state))


if __name__ == "__main__":
    K = 4          # num groups (k > 1)
    H = 32         # hidden_size == fc_size
    A = 100        # last_fc_size of the attention head
    B = 8          # batch (B*K = 32 rows -> a single grid step)
    M = 512        # input size (out_fc hard-codes fc + fc + 512)

    key = jax.random.PRNGKey(0)
    kp, kx, ks = jax.random.split(key, 3)
    params = init_params(kp, H, A, M)

    x = jax.random.normal(kx, (B * K, M), jnp.float32)
    state = jax.random.normal(ks, (B * K, H), jnp.float32)

    out_x, out_state = recurrent_layer_forward(x, state, params, K)
    jax.block_until_ready((out_x, out_state))

    assert out_x.shape == (B * K, H) and out_state.shape == (B * K, H)

    # self-check against a pure-JAX port of the PyTorch reference
    ref_x, ref_s = reference_forward(x, state, params, K)
    err = max(float(jnp.max(jnp.abs(out_x - ref_x))),
              float(jnp.max(jnp.abs(out_state - ref_s))))
    assert err < 1e-3, f"kernel/reference mismatch: max abs err {err}"

    print("KERNEL_OK")
</pallas_src>

<mosaic_0001>
module attributes {stable_mosaic.version = 11 : i64} {
  func.func @kernel(%arg0: i32, %arg1: memref<32x512xf32, #tpu.memory_space<vmem>>, %arg2: memref<32x32xf32, #tpu.memory_space<vmem>>, %arg3: memref<32x32xf32, #tpu.memory_space<vmem>>, %arg4: memref<32x96xf32, #tpu.memory_space<vmem>>, %arg5: memref<32x132xf32, #tpu.memory_space<vmem>>, %arg6: memref<32x32xf32, #tpu.memory_space<vmem>>, %arg7: memref<512x32xf32, #tpu.memory_space<vmem>>, %arg8: memref<10x32xf32, #tpu.memory_space<vmem>>, %arg9: memref<4x100xf32, #tpu.memory_space<vmem>>, %arg10: memref<1x1xf32, #tpu.memory_space<vmem>>, %arg11: memref<32x64xf32, #tpu.memory_space<vmem>>) attributes {dimension_semantics = [#tpu.dimension_semantics<parallel>], iteration_bounds = array<i64: 1>, scalar_prefetch = 0 : i64, scratch_operands = 0 : i64, tpu.core_type = #tpu.core_type<tc>, window_params = [{transform_indices = @transform_0, window_bounds = array<i64: 32, 512>}, {transform_indices = @transform_1, window_bounds = array<i64: 32, 32>}, {pipeline_mode = #tpu.pipeline_mode<synchronous>, transform_indices = @transform_2, window_bounds = array<i64: 32, 32>}, {pipeline_mode = #tpu.pipeline_mode<synchronous>, transform_indices = @transform_3, window_bounds = array<i64: 32, 96>}, {pipeline_mode = #tpu.pipeline_mode<synchronous>, transform_indices = @transform_4, window_bounds = array<i64: 32, 132>}, {pipeline_mode = #tpu.pipeline_mode<synchronous>, transform_indices = @transform_5, window_bounds = array<i64: 32, 32>}, {pipeline_mode = #tpu.pipeline_mode<synchronous>, transform_indices = @transform_6, window_bounds = array<i64: 512, 32>}, {pipeline_mode = #tpu.pipeline_mode<synchronous>, transform_indices = @transform_7, window_bounds = array<i64: 10, 32>}, {pipeline_mode = #tpu.pipeline_mode<synchronous>, transform_indices = @transform_8, window_bounds = array<i64: 4, 100>}, {pipeline_mode = #tpu.pipeline_mode<synchronous>, transform_indices = @transform_9, window_bounds = array<i64: 1, 1>}, {transform_indices = @transform_10, window_bounds = array<i64: 32, 64>}]} {
    %c0 = arith.constant 0 : index
    %c0_0 = arith.constant 0 : index
    %0 = vector.load %arg8[%c0, %c0_0] : memref<10x32xf32, #tpu.memory_space<vmem>>, vector<10x32xf32>
    %1 = vector.extract_strided_slice %0 {offsets = [0, 0], sizes = [1, 32], strides = [1, 1]} : vector<10x32xf32> to vector<1x32xf32>
    %2 = vector.extract_strided_slice %0 {offsets = [1, 0], sizes = [1, 32], strides = [1, 1]} : vector<10x32xf32> to vector<1x32xf32>
    %3 = vector.extract_strided_slice %0 {offsets = [2, 0], sizes = [1, 32], strides = [1, 1]} : vector<10x32xf32> to vector<1x32xf32>
    %4 = vector.extract_strided_slice %0 {offsets = [3, 0], sizes = [1, 32], strides = [1, 1]} : vector<10x32xf32> to vector<1x32xf32>
    %5 = vector.extract_strided_slice %0 {offsets = [4, 0], sizes = [1, 32], strides = [1, 1]} : vector<10x32xf32> to vector<1x32xf32>
    %6 = vector.extract_strided_slice %0 {offsets = [5, 0], sizes = [1, 32], strides = [1, 1]} : vector<10x32xf32> to vector<1x32xf32>
    %7 = vector.extract_strided_slice %0 {offsets = [6, 0], sizes = [1, 32], strides = [1, 1]} : vector<10x32xf32> to vector<1x32xf32>
    %8 = vector.extract_strided_slice %0 {offsets = [7, 0], sizes = [1, 32], strides = [1, 1]} : vector<10x32xf32> to vector<1x32xf32>
    %9 = vector.extract_strided_slice %0 {offsets = [8, 0], sizes = [1, 32], strides = [1, 1]} : vector<10x32xf32> to vector<1x32xf32>
    %10 = vector.extract_strided_slice %0 {offsets = [9, 0], sizes = [1, 32], strides = [1, 1]} : vector<10x32xf32> to vector<1x32xf32>
    %c0_1 = arith.constant 0 : index
    %c0_2 = arith.constant 0 : index
    %11 = vector.load %arg9[%c0_1, %c0_2] : memref<4x100xf32, #tpu.memory_space<vmem>>, vector<4x100xf32>
    %12 = vector.extract_strided_slice %11 {offsets = [0, 0], sizes = [1, 100], strides = [1, 1]} : vector<4x100xf32> to vector<1x100xf32>
    %13 = vector.extract_strided_slice %11 {offsets = [1, 0], sizes = [1, 100], strides = [1, 1]} : vector<4x100xf32> to vector<1x100xf32>
    %14 = vector.extract_strided_slice %11 {offsets = [2, 0], sizes = [1, 100], strides = [1, 1]} : vector<4x100xf32> to vector<1x100xf32>
    %15 = vector.extract_strided_slice %11 {offsets = [3, 0], sizes = [1, 100], strides = [1, 1]} : vector<4x100xf32> to vector<1x100xf32>
    %c0_3 = arith.constant 0 : index
    %c0_4 = arith.constant 0 : index
    %16 = vector.load %arg10[%c0_3, %c0_4] : memref<1x1xf32, #tpu.memory_space<vmem>>, vector<1x1xf32>
    %17 = tpu.iota {dimensions = array<i32: 0>} : vector<32x1xi32>
    %c3_i32 = arith.constant 3 : i32
    %18 = vector.broadcast %c3_i32 : i32 to vector<32x1xi32>
    %19 = arith.andi %17, %18 : vector<32x1xi32>
    %c0_5 = arith.constant 0 : index
    %c0_6 = arith.constant 0 : index
    %20 = vector.load %arg2[%c0_5, %c0_6] : memref<32x32xf32, #tpu.memory_space<vmem>>, vector<32x32xf32>
    %c0_7 = arith.constant 0 : index
    %c0_8 = arith.constant 0 : index
    %21 = vector.load %arg3[%c0_7, %c0_8] : memref<32x32xf32, #tpu.memory_space<vmem>>, vector<32x32xf32>
    %cst = arith.constant dense<0.000000e+00> : vector<32x32xf32>
    %22 = tpu.matmul %20, %21, %cst {dimension_numbers = #tpu.dot_dimension_numbers<[1], [0], [0], [1], [0, 0, 1, 1], [], []>} : vector<32x32xf32>, vector<32x32xf32>, vector<32x32xf32> -> vector<32x32xf32>
    %23 = vector.broadcast %1 : vector<1x32xf32> to vector<32x32xf32>
    %24 = arith.addf %22, %23 : vector<32x32xf32>
    %cst_9 = arith.constant dense<0.000000e+00> : vector<32xf32>
    %25 = vector.multi_reduction <add>, %24, %cst_9 [1] : vector<32x32xf32> to vector<32xf32>
    %26 = vector.shape_cast %25 : vector<32xf32> to vector<32x1xf32>
    %cst_10 = arith.constant 3.200000e+01 : f32
    %27 = vector.broadcast %cst_10 : f32 to vector<32x1xf32>
    %28 = arith.divf %26, %27 : vector<32x1xf32>
    %29 = vector.broadcast %28 : vector<32x1xf32> to vector<32x32xf32>
    %30 = arith.subf %24, %29 : vector<32x32xf32>
    %31 = arith.mulf %30, %30 : vector<32x32xf32>
    %cst_11 = arith.constant dense<0.000000e+00> : vector<32xf32>
    %32 = vector.multi_reduction <add>, %31, %cst_11 [1] : vector<32x32xf32> to vector<32xf32>
    %33 = vector.shape_cast %32 : vector<32xf32> to vector<32x1xf32>
    %cst_12 = arith.constant 3.200000e+01 : f32
    %34 = vector.broadcast %cst_12 : f32 to vector<32x1xf32>
    %35 = arith.divf %33, %34 : vector<32x1xf32>
    %cst_13 = arith.constant 9.99999974E-6 : f32
    %36 = vector.broadcast %cst_13 : f32 to vector<32x1xf32>
    %37 = arith.addf %35, %36 : vector<32x1xf32>
    %38 = math.rsqrt %37 : vector<32x1xf32>
    %39 = vector.broadcast %38 : vector<32x1xf32> to vector<32x32xf32>
    %40 = arith.mulf %30, %39 : vector<32x32xf32>
    %41 = vector.broadcast %2 : vector<1x32xf32> to vector<32x32xf32>
    %42 = arith.mulf %40, %41 : vector<32x32xf32>
    %43 = vector.broadcast %3 : vector<1x32xf32> to vector<32x32xf32>
    %44 = arith.addf %42, %43 : vector<32x32xf32>
    %cst_14 = arith.constant 0.000000e+00 : f32
    %45 = vector.broadcast %cst_14 : f32 to vector<32x32xf32>
    %46 = arith.maximumf %44, %45 : vector<32x32xf32>
    %c0_15 = arith.constant 0 : index
    %c0_16 = arith.constant 0 : index
    %47 = vector.load %arg4[%c0_15, %c0_16] : memref<32x96xf32, #tpu.memory_space<vmem>>, vector<32x96xf32>
    %cst_17 = arith.constant dense<0.000000e+00> : vector<32x96xf32>
    %48 = tpu.matmul %46, %47, %cst_17 {dimension_numbers = #tpu.dot_dimension_numbers<[1], [0], [0], [1], [0, 0, 1, 1], [], []>} : vector<32x32xf32>, vector<32x96xf32>, vector<32x96xf32> -> vector<32x96xf32>
    %49 = vector.extract_strided_slice %48 {offsets = [0, 0], sizes = [32, 32], strides = [1, 1]} : vector<32x96xf32> to vector<32x32xf32>
    %50 = vector.extract_strided_slice %48 {offsets = [0, 32], sizes = [32, 32], strides = [1, 1]} : vector<32x96xf32> to vector<32x32xf32>
    %51 = vector.extract_strided_slice %48 {offsets = [0, 64], sizes = [32, 32], strides = [1, 1]} : vector<32x96xf32> to vector<32x32xf32>
    %52 = vector.broadcast %4 : vector<1x32xf32> to vector<32x32xf32>
    %53 = arith.addf %49, %52 : vector<32x32xf32>
    %c31_i32 = arith.constant 31 : i32
    %54 = tpu.dynamic_rotate %50 by %c31_i32 dim 0 : vector<32x32xf32>, i32 -> vector<32x32xf32>
    %c3_i32_18 = arith.constant 3 : i32
    %55 = tpu.dynamic_rotate %50 by %c3_i32_18 dim 0 : vector<32x32xf32>, i32 -> vector<32x32xf32>
    %c3_i32_19 = arith.constant 3 : i32
    %56 = vector.broadcast %c3_i32_19 : i32 to vector<32x1xi32>
    %57 = arith.cmpi slt, %19, %56 : vector<32x1xi32>
    %58 = vector.shape_cast %57 : vector<32x1xi1> to vector<32x1xi1>
    %59 = vector.broadcast %58 : vector<32x1xi1> to vector<32x32xi1>
    %60 = arith.select %59, %54, %55 : vector<32x32xi1>, vector<32x32xf32>
    %61 = arith.addf %53, %60 : vector<32x32xf32>
    %c30_i32 = arith.constant 30 : i32
    %62 = tpu.dynamic_rotate %50 by %c30_i32 dim 0 : vector<32x32xf32>, i32 -> vector<32x32xf32>
    %c2_i32 = arith.constant 2 : i32
    %63 = tpu.dynamic_rotate %50 by %c2_i32 dim 0 : vector<32x32xf32>, i32 -> vector<32x32xf32>
    %c2_i32_20 = arith.constant 2 : i32
    %64 = vector.broadcast %c2_i32_20 : i32 to vector<32x1xi32>
    %65 = arith.cmpi slt, %19, %64 : vector<32x1xi32>
    %66 = vector.shape_cast %65 : vector<32x1xi1> to vector<32x1xi1>
    %67 = vector.broadcast %66 : vector<32x1xi1> to vector<32x32xi1>
    %68 = arith.select %67, %62, %63 : vector<32x32xi1>, vector<32x32xf32>
    %69 = arith.addf %53, %68 : vector<32x32xf32>
    %c29_i32 = arith.constant 29 : i32
    %70 = tpu.dynamic_rotate %50 by %c29_i32 dim 0 : vector<32x32xf32>, i32 -> vector<32x32xf32>
    %c1_i32 = arith.constant 1 : i32
    %71 = tpu.dynamic_rotate %50 by %c1_i32 dim 0 : vector<32x32xf32>, i32 -> vector<32x32xf32>
    %c1_i32_21 = arith.constant 1 : i32
    %72 = vector.broadcast %c1_i32_21 : i32 to vector<32x1xi32>
    %73 = arith.cmpi slt, %19, %72 : vector<32x1xi32>
    %74 = vector.shape_cast %73 : vector<32x1xi1> to vector<32x1xi1>
    %75 = vector.broadcast %74 : vector<32x1xi1> to vector<32x32xi1>
    %76 = arith.select %75, %70, %71 : vector<32x32xi1>, vector<32x32xf32>
    %77 = arith.addf %53, %76 : vector<32x32xf32>
    %78 = tpu.concatenate %61, %69, %77 in 0 : vector<32x32xf32>, vector<32x32xf32>, vector<32x32xf32> -> vector<96x32xf32>
    %cst_22 = arith.constant dense<0.000000e+00> : vector<96xf32>
    %79 = vector.multi_reduction <add>, %78, %cst_22 [1] : vector<96x32xf32> to vector<96xf32>
    %80 = vector.shape_cast %79 : vector<96xf32> to vector<96x1xf32>
    %cst_23 = arith.constant 3.200000e+01 : f32
    %81 = vector.broadcast %cst_23 : f32 to vector<96x1xf32>
    %82 = arith.divf %80, %81 : vector<96x1xf32>
    %83 = vector.broadcast %82 : vector<96x1xf32> to vector<96x32xf32>
    %84 = arith.subf %78, %83 : vector<96x32xf32>
    %85 = arith.mulf %84, %84 : vector<96x32xf32>
    %cst_24 = arith.constant dense<0.000000e+00> : vector<96xf32>
    %86 = vector.multi_reduction <add>, %85, %cst_24 [1] : vector<96x32xf32> to vector<96xf32>
    %87 = vector.shape_cast %86 : vector<96xf32> to vector<96x1xf32>
    %cst_25 = arith.constant 3.200000e+01 : f32
    %88 = vector.broadcast %cst_25 : f32 to vector<96x1xf32>
    %89 = arith.divf %87, %88 : vector<96x1xf32>
    %cst_26 = arith.constant 9.99999974E-6 : f32
    %90 = vector.broadcast %cst_26 : f32 to vector<96x1xf32>
    %91 = arith.addf %89, %90 : vector<96x1xf32>
    %92 = math.rsqrt %91 : vector<96x1xf32>
    %93 = vector.broadcast %92 : vector<96x1xf32> to vector<96x32xf32>
    %94 = arith.mulf %84, %93 : vector<96x32xf32>
    %95 = vector.broadcast %5 : vector<1x32xf32> to vector<96x32xf32>
    %96 = arith.mulf %94, %95 : vector<96x32xf32>
    %97 = vector.broadcast %6 : vector<1x32xf32> to vector<96x32xf32>
    %98 = arith.addf %96, %97 : vector<96x32xf32>
    %cst_27 = arith.constant 0.000000e+00 : f32
    %99 = vector.broadcast %cst_27 : f32 to vector<96x32xf32>
    %100 = arith.maximumf %98, %99 : vector<96x32xf32>
    %c0_28 = arith.constant 0 : index
    %c0_29 = arith.constant 0 : index
    %101 = vector.load %arg5[%c0_28, %c0_29] : memref<32x132xf32, #tpu.memory_space<vmem>>, vector<32x132xf32>
    %cst_30 = arith.constant dense<0.000000e+00> : vector<96x132xf32>
    %102 = tpu.matmul %100, %101, %cst_30 {dimension_numbers = #tpu.dot_dimension_numbers<[1], [0], [0], [1], [0, 0, 1, 1], [], []>} : vector<96x32xf32>, vector<32x132xf32>, vector<96x132xf32> -> vector<96x132xf32>
    %103 = vector.extract_strided_slice %102 {offsets = [0, 0], sizes = [96, 32], strides = [1, 1]} : vector<96x132xf32> to vector<96x32xf32>
    %104 = vector.broadcast %7 : vector<1x32xf32> to vector<96x32xf32>
    %105 = arith.addf %103, %104 : vector<96x32xf32>
    %cst_31 = arith.constant dense<0.000000e+00> : vector<96xf32>
    %106 = vector.multi_reduction <add>, %105, %cst_31 [1] : vector<96x32xf32> to vector<96xf32>
    %107 = vector.shape_cast %106 : vector<96xf32> to vector<96x1xf32>
    %cst_32 = arith.constant 3.200000e+01 : f32
    %108 = vector.broadcast %cst_32 : f32 to vector<96x1xf32>
    %109 = arith.divf %107, %108 : vector<96x1xf32>
    %110 = vector.broadcast %109 : vector<96x1xf32> to vector<96x32xf32>
    %111 = arith.subf %105, %110 : vector<96x32xf32>
    %112 = arith.mulf %111, %111 : vector<96x32xf32>
    %cst_33 = arith.constant dense<0.000000e+00> : vector<96xf32>
    %113 = vector.multi_reduction <add>, %112, %cst_33 [1] : vector<96x32xf32> to vector<96xf32>
    %114 = vector.shape_cast %113 : vector<96xf32> to vector<96x1xf32>
    %cst_34 = arith.constant 3.200000e+01 : f32
    %115 = vector.broadcast %cst_34 : f32 to vector<96x1xf32>
    %116 = arith.divf %114, %115 : vector<96x1xf32>
    %cst_35 = arith.constant 9.99999974E-6 : f32
    %117 = vector.broadcast %cst_35 : f32 to vector<96x1xf32>
    %118 = arith.addf %116, %117 : vector<96x1xf32>
    %119 = math.rsqrt %118 : vector<96x1xf32>
    %120 = vector.broadcast %119 : vector<96x1xf32> to vector<96x32xf32>
    %121 = arith.mulf %111, %120 : vector<96x32xf32>
    %122 = vector.broadcast %8 : vector<1x32xf32> to vector<96x32xf32>
    %123 = arith.mulf %121, %122 : vector<96x32xf32>
    %124 = vector.broadcast %9 : vector<1x32xf32> to vector<96x32xf32>
    %125 = arith.addf %123, %124 : vector<96x32xf32>
    %cst_36 = arith.constant 0.000000e+00 : f32
    %126 = vector.broadcast %cst_36 : f32 to vector<96x32xf32>
    %127 = arith.maximumf %125, %126 : vector<96x32xf32>
    %128 = vector.extract_strided_slice %102 {offsets = [0, 32], sizes = [96, 100], strides = [1, 1]} : vector<96x132xf32> to vector<96x100xf32>
    %129 = vector.broadcast %12 : vector<1x100xf32> to vector<96x100xf32>
    %130 = arith.addf %128, %129 : vector<96x100xf32>
    %cst_37 = arith.constant dense<0.000000e+00> : vector<96xf32>
    %131 = vector.multi_reduction <add>, %130, %cst_37 [1] : vector<96x100xf32> to vector<96xf32>
    %132 = vector.shape_cast %131 : vector<96xf32> to vector<96x1xf32>
    %cst_38 = arith.constant 1.000000e+02 : f32
    %133 = vector.broadcast %cst_38 : f32 to vector<96x1xf32>
    %134 = arith.divf %132, %133 : vector<96x1xf32>
    %135 = vector.broadcast %134 : vector<96x1xf32> to vector<96x100xf32>
    %136 = arith.subf %130, %135 : vector<96x100xf32>
    %137 = arith.mulf %136, %136 : vector<96x100xf32>
    %cst_39 = arith.constant dense<0.000000e+00> : vector<96xf32>
    %138 = vector.multi_reduction <add>, %137, %cst_39 [1] : vector<96x100xf32> to vector<96xf32>
    %139 = vector.shape_cast %138 : vector<96xf32> to vector<96x1xf32>
    %cst_40 = arith.constant 1.000000e+02 : f32
    %140 = vector.broadcast %cst_40 : f32 to vector<96x1xf32>
    %141 = arith.divf %139, %140 : vector<96x1xf32>
    %cst_41 = arith.constant 9.99999974E-6 : f32
    %142 = vector.broadcast %cst_41 : f32 to vector<96x1xf32>
    %143 = arith.addf %141, %142 : vector<96x1xf32>
    %144 = math.rsqrt %143 : vector<96x1xf32>
    %145 = vector.broadcast %144 : vector<96x1xf32> to vector<96x100xf32>
    %146 = arith.mulf %136, %145 : vector<96x100xf32>
    %147 = vector.broadcast %13 : vector<1x100xf32> to vector<96x100xf32>
    %148 = arith.mulf %146, %147 : vector<96x100xf32>
    %149 = vector.broadcast %14 : vector<1x100xf32> to vector<96x100xf32>
    %150 = arith.addf %148, %149 : vector<96x100xf32>
    %151 = math.tanh %150 : vector<96x100xf32>
    %152 = vector.broadcast %15 : vector<1x100xf32> to vector<96x100xf32>
    %153 = arith.mulf %151, %152 : vector<96x100xf32>
    %cst_42 = arith.constant dense<0.000000e+00> : vector<96xf32>
    %154 = vector.multi_reduction <add>, %153, %cst_42 [1] : vector<96x100xf32> to vector<96xf32>
    %155 = vector.shape_cast %154 : vector<96xf32> to vector<96x1xf32>
    %156 = vector.broadcast %16 : vector<1x1xf32> to vector<96x1xf32>
    %157 = arith.addf %155, %156 : vector<96x1xf32>
    %158 = arith.negf %157 : vector<96x1xf32>
    %159 = math.exp %158 : vector<96x1xf32>
    %cst_43 = arith.constant 1.000000e+00 : f32
    %160 = vector.broadcast %cst_43 : f32 to vector<96x1xf32>
    %161 = arith.addf %160, %159 : vector<96x1xf32>
    %162 = arith.divf %160, %161 : vector<96x1xf32>
    %163 = vector.broadcast %162 : vector<96x1xf32> to vector<96x32xf32>
    %164 = arith.mulf %127, %163 : vector<96x32xf32>
    %165 = vector.extract_strided_slice %164 {offsets = [0, 0], sizes = [32, 32], strides = [1, 1]} : vector<96x32xf32> to vector<32x32xf32>
    %166 = vector.extract_strided_slice %164 {offsets = [32, 0], sizes = [32, 32], strides = [1, 1]} : vector<96x32xf32> to vector<32x32xf32>
    %167 = arith.addf %165, %166 : vector<32x32xf32>
    %168 = vector.extract_strided_slice %164 {offsets = [64, 0], sizes = [32, 32], strides = [1, 1]} : vector<96x32xf32> to vector<32x32xf32>
    %169 = arith.addf %167, %168 : vector<32x32xf32>
    %c0_44 = arith.constant 0 : index
    %c0_45 = arith.constant 0 : index
    %170 = vector.load %arg6[%c0_44, %c0_45] : memref<32x32xf32, #tpu.memory_space<vmem>>, vector<32x32xf32>
    %cst_46 = arith.constant dense<0.000000e+00> : vector<32x32xf32>
    %171 = tpu.matmul %169, %170, %cst_46 {dimension_numbers = #tpu.dot_dimension_numbers<[1], [0], [0], [1], [0, 0, 1, 1], [], []>} : vector<32x32xf32>, vector<32x32xf32>, vector<32x32xf32> -> vector<32x32xf32>
    %172 = arith.addf %51, %171 : vector<32x32xf32>
    %c0_47 = arith.constant 0 : index
    %c0_48 = arith.constant 0 : index
    %173 = vector.load %arg1[%c0_47, %c0_48] : memref<32x512xf32, #tpu.memory_space<vmem>>, vector<32x512xf32>
    %c0_49 = arith.constant 0 : index
    %c0_50 = arith.constant 0 : index
    %174 = vector.load %arg7[%c0_49, %c0_50] : memref<512x32xf32, #tpu.memory_space<vmem>>, vector<512x32xf32>
    %cst_51 = arith.constant dense<0.000000e+00> : vector<32x32xf32>
    %175 = tpu.matmul %173, %174, %cst_51 {dimension_numbers = #tpu.dot_dimension_numbers<[1], [0], [0], [1], [0, 0, 1, 1], [], []>} : vector<32x512xf32>, vector<512x32xf32>, vector<32x32xf32> -> vector<32x32xf32>
    %176 = arith.addf %172, %175 : vector<32x32xf32>
    %177 = vector.broadcast %10 : vector<1x32xf32> to vector<32x32xf32>
    %178 = arith.addf %176, %177 : vector<32x32xf32>
    %cst_52 = arith.constant dense<0.000000e+00> : vector<32xf32>
    %179 = vector.multi_reduction <add>, %178, %cst_52 [1] : vector<32x32xf32> to vector<32xf32>
    %180 = vector.shape_cast %179 : vector<32xf32> to vector<32x1xf32>
    %cst_53 = arith.constant 3.200000e+01 : f32
    %181 = vector.broadcast %cst_53 : f32 to vector<32x1xf32>
    %182 = arith.divf %180, %181 : vector<32x1xf32>
    %183 = vector.broadcast %182 : vector<32x1xf32> to vector<32x32xf32>
    %184 = arith.subf %178, %183 : vector<32x32xf32>
    %185 = arith.mulf %184, %184 : vector<32x32xf32>
    %cst_54 = arith.constant dense<0.000000e+00> : vector<32xf32>
    %186 = vector.multi_reduction <add>, %185, %cst_54 [1] : vector<32x32xf32> to vector<32xf32>
    %187 = vector.shape_cast %186 : vector<32xf32> to vector<32x1xf32>
    %cst_55 = arith.constant 3.200000e+01 : f32
    %188 = vector.broadcast %cst_55 : f32 to vector<32x1xf32>
    %189 = arith.divf %187, %188 : vector<32x1xf32>
    %cst_56 = arith.constant 9.99999974E-6 : f32
    %190 = vector.broadcast %cst_56 : f32 to vector<32x1xf32>
    %191 = arith.addf %189, %190 : vector<32x1xf32>
    %192 = math.rsqrt %191 : vector<32x1xf32>
    %193 = vector.broadcast %192 : vector<32x1xf32> to vector<32x32xf32>
    %194 = arith.mulf %184, %193 : vector<32x32xf32>
    %195 = arith.negf %194 : vector<32x32xf32>
    %196 = math.exp %195 : vector<32x32xf32>
    %cst_57 = arith.constant 1.000000e+00 : f32
    %197 = vector.broadcast %cst_57 : f32 to vector<32x32xf32>
    %198 = arith.addf %197, %196 : vector<32x32xf32>
    %199 = arith.divf %197, %198 : vector<32x32xf32>
    %200 = arith.negf %178 : vector<32x32xf32>
    %201 = math.exp %200 : vector<32x32xf32>
    %cst_58 = arith.constant 1.000000e+00 : f32
    %202 = vector.broadcast %cst_58 : f32 to vector<32x32xf32>
    %203 = arith.addf %202, %201 : vector<32x32xf32>
    %204 = arith.divf %202, %203 : vector<32x32xf32>
    %205 = tpu.concatenate %199, %204 in 1 : vector<32x32xf32>, vector<32x32xf32> -> vector<32x64xf32>
    %c0_59 = arith.constant 0 : index
    %c0_60 = arith.constant 0 : index
    %206 = vector.load %arg11[%c0_59, %c0_60] : memref<32x64xf32, #tpu.memory_space<vmem>>, vector<32x64xf32>
    tpu.vector_store %arg11[%c0_59, %c0_60], %205 {strides = array<i32>} : memref<32x64xf32, #tpu.memory_space<vmem>>, vector<32x64xf32>,
    return
  }
  func.func @transform_0(%arg0: i32) -> (i32, i32) {
    %c0_i32 = arith.constant 0 : i32
    %c0_i32_0 = arith.constant 0 : i32
    return %arg0, %c0_i32 : i32, i32
  }
  func.func @transform_1(%arg0: i32) -> (i32, i32) {
    %c0_i32 = arith.constant 0 : i32
    %c0_i32_0 = arith.constant 0 : i32
    return %arg0, %c0_i32 : i32, i32
  }
  func.func @transform_2(%arg0: i32) -> (i32, i32) {
    %c0_i32 = arith.constant 0 : i32
    %c0_i32_0 = arith.constant 0 : i32
    %c0_i32_1 = arith.constant 0 : i32
    return %c0_i32, %c0_i32_0 : i32, i32
  }
  func.func @transform_3(%arg0: i32) -> (i32, i32) {
    %c0_i32 = arith.constant 0 : i32
    %c0_i32_0 = arith.constant 0 : i32
    %c0_i32_1 = arith.constant 0 : i32
    return %c0_i32, %c0_i32_0 : i32, i32
  }
  func.func @transform_4(%arg0: i32) -> (i32, i32) {
    %c0_i32 = arith.constant 0 : i32
    %c0_i32_0 = arith.constant 0 : i32
    %c0_i32_1 = arith.constant 0 : i32
    return %c0_i32, %c0_i32_0 : i32, i32
  }
  func.func @transform_5(%arg0: i32) -> (i32, i32) {
    %c0_i32 = arith.constant 0 : i32
    %c0_i32_0 = arith.constant 0 : i32
    %c0_i32_1 = arith.constant 0 : i32
    return %c0_i32, %c0_i32_0 : i32, i32
  }
  func.func @transform_6(%arg0: i32) -> (i32, i32) {
    %c0_i32 = arith.constant 0 : i32
    %c0_i32_0 = arith.constant 0 : i32
    %c0_i32_1 = arith.constant 0 : i32
    return %c0_i32, %c0_i32_0 : i32, i32
  }
  func.func @transform_7(%arg0: i32) -> (i32, i32) {
    %c0_i32 = arith.constant 0 : i32
    %c0_i32_0 = arith.constant 0 : i32
    %c0_i32_1 = arith.constant 0 : i32
    return %c0_i32, %c0_i32_0 : i32, i32
  }
  func.func @transform_8(%arg0: i32) -> (i32, i32) {
    %c0_i32 = arith.constant 0 : i32
    %c0_i32_0 = arith.constant 0 : i32
    %c0_i32_1 = arith.constant 0 : i32
    return %c0_i32, %c0_i32_0 : i32, i32
  }
  func.func @transform_9(%arg0: i32) -> (i32, i32) {
    %c0_i32 = arith.constant 0 : i32
    %c0_i32_0 = arith.constant 0 : i32
    %c0_i32_1 = arith.constant 0 : i32
    return %c0_i32, %c0_i32_0 : i32, i32
  }
  func.func @transform_10(%arg0: i32) -> (i32, i32) {
    %c0_i32 = arith.constant 0 : i32
    %c0_i32_0 = arith.constant 0 : i32
    return %arg0, %c0_i32 : i32, i32
  }
}

</mosaic_0001>

<llo_original>
// kernel: tpu_custom_call.1
$region0: #{tpu_custom_call.1}
  #allocation0 [shape = 'u32[]', space=smem, size = 0x4, offset = 0x4, fixed_abs, tag = 'smem constant byte address 0x4 - core index']
  #allocation1 [shape = 'u32[144,128]{1,0:T(1,128)}', space=vmem, size = 0x12000, scoped, tag = 'internal scratch']
  #allocation2 [shape = 'f32[1,1]{1,0:T(1,128)S(1)}', space=vmem, size = 0x200, scoped, tag = 'scoped memory for tpu_custom_call.1']
  %s0 = inlined_call_operand.vmem [shape: f32[32,512], index: 0, kind: input, shape index: {}]
  %s1 = inlined_call_operand.vmem [shape: f32[32,32], index: 1, kind: input, shape index: {}]
  %s2 = inlined_call_operand.vmem [shape: f32[32,32], index: 2, kind: input, shape index: {}]
  %s3 = inlined_call_operand.vmem [shape: f32[32,96], index: 3, kind: input, shape index: {}]
  %s4 = inlined_call_operand.vmem [shape: f32[32,132], index: 4, kind: input, shape index: {}]
  %s5 = inlined_call_operand.vmem [shape: f32[32,32], index: 5, kind: input, shape index: {}]
  %s6 = inlined_call_operand.vmem [shape: f32[512,32], index: 6, kind: input, shape index: {}]
  %s7 = inlined_call_operand.vmem [shape: f32[10,32], index: 7, kind: input, shape index: {}]
  %s8 = inlined_call_operand.vmem [shape: f32[4,100], index: 8, kind: input, shape index: {}]
  %s9 = inlined_call_operand.<no memory space> [shape: f32[1,1], index: 9, kind: input, shape index: {}]
  %s10 = inlined_call_operand.hbm [shape: f32[32,64], index: 10, kind: output, shape index: {}]
  %s11 = sld [smem:[#allocation0]]
  $region50: #{tpu_custom_call.1} parent=0
    _
  %s13 = ssub.s32 1, %s11
  %s14 = scalar_select 0, %s13, %s11
  %v15 = vstv %s9
  %16 = vst [vmem:[#allocation2] sm:$0x1] %v15
  $region1: #{tpu_custom_call.1} parent=0
    #allocation3 [shape = 'u8[16384]{0}', space=vmem, size = 0x4000, scoped, tag = 'output window, operand 0, single buffered']
    #allocation4 [shape = 's32[1]{0}', space=sflag, size = 0x4, scoped, tag = 'scoped memory for tpu_custom_call.1']
    %17 = vsyncpa [#allocation4], 0
    // Predicated region
    $region2: #{tpu_custom_call.1} parent=1 // pred_check
      _
    $region3: #{tpu_custom_call.1} parent=1 // pred_check_branch
      %19 = sbr.rel (0) target = $region5
    $region4: #{tpu_custom_call.1} parent=1 // pred_region
      _
    $region5: #{tpu_custom_call.1} parent=1 // pred_fallthru
      _
    // Predicated region
    $region6: #{tpu_custom_call.1} parent=1 // pred_check
      _
    $region7: #{tpu_custom_call.1} parent=1 // pred_check_branch
      %21 = sbr.rel (0) target = $region9
    $region8: #{tpu_custom_call.1} parent=1 // pred_region
      _
    $region9: #{tpu_custom_call.1} parent=1 // pred_fallthru
      _
    // Predicated region
    $region10: #{tpu_custom_call.1} parent=1 // pred_check
      _
    $region11: #{tpu_custom_call.1} parent=1 // pred_check_branch
      %23 = sbr.rel (0) target = $region13
    $region12: #{tpu_custom_call.1} parent=1 // pred_region
      _
    $region13: #{tpu_custom_call.1} parent=1 // pred_fallthru
      _
    // Predicated region
    $region14: #{tpu_custom_call.1} parent=1 // pred_check
      _
    $region15: #{tpu_custom_call.1} parent=1 // pred_check_branch
      %25 = sbr.rel (0) target = $region17
    $region16: #{tpu_custom_call.1} parent=1 // pred_region
      _
    $region17: #{tpu_custom_call.1} parent=1 // pred_fallthru
      _
    // Predicated region
    $region18: #{tpu_custom_call.1} parent=1 // pred_check
      _
    $region19: #{tpu_custom_call.1} parent=1 // pred_check_branch
      %27 = sbr.rel (0) target = $region21
    $region20: #{tpu_custom_call.1} parent=1 // pred_region
      _
    $region21: #{tpu_custom_call.1} parent=1 // pred_fallthru
      _
    // Predicated region
    $region22: #{tpu_custom_call.1} parent=1 // pred_check
      _
    $region23: #{tpu_custom_call.1} parent=1 // pred_check_branch
      %29 = sbr.rel (0) target = $region25
    $region24: #{tpu_custom_call.1} parent=1 // pred_region
      _
    $region25: #{tpu_custom_call.1} parent=1 // pred_fallthru
      _
    // Predicated region
    $region26: #{tpu_custom_call.1} parent=1 // pred_check
      _
    $region27: #{tpu_custom_call.1} parent=1 // pred_check_branch
      %31 = sbr.rel (0) target = $region29
    $region28: #{tpu_custom_call.1} parent=1 // pred_region
      _
    $region29: #{tpu_custom_call.1} parent=1 // pred_fallthru
      _
    // Predicated region
    $region30: #{tpu_custom_call.1} parent=1 // pred_check
      _
    $region31: #{tpu_custom_call.1} parent=1 // pred_check_branch
      %33 = sbr.rel (0) target = $region33
    $region32: #{tpu_custom_call.1} parent=1 // pred_region
      _
    $region33: #{tpu_custom_call.1} parent=1 // pred_fallthru
      _
    // Predicated region
    $region34: #{tpu_custom_call.1} parent=1 // pred_check
      _
    $region35: #{tpu_custom_call.1} parent=1 // pred_check_branch
      %35 = sbr.rel (0) target = $region37
    $region36: #{tpu_custom_call.1} parent=1 // pred_region
      _
    $region37: #{tpu_custom_call.1} parent=1 // pred_fallthru
      _
    // Predicated region
    $region38: #{tpu_custom_call.1} parent=1 // pred_check
      _
    $region39: #{tpu_custom_call.1} parent=1 // pred_check_branch
      %37 = sbr.rel (0) target = $region41
    $region40: #{tpu_custom_call.1} parent=1 // pred_region
      _
    $region41: #{tpu_custom_call.1} parent=1 // pred_fallthru
      _
    %v38 = vld [vmem:[%s7] sm:$0xff]
    %v39 = vld [vmem:[%s7 + $0x8] sm:$0x3]
    %v40 = vld [vmem:[%s8] sm:$0xf]
    %v41 = vld [vmem:[#allocation2] sm:$0x1]
    %v42 = vlaneseq
    %v43 = vshrl.u32 %v42, 7
    %v44 = vadd.s32 %v43, 8
    %v45 = vadd.s32 %v43, 16
    %v46 = vadd.s32 %v43, 24
    %v47 = vand.u32 %v43, 3
    %v48 = vand.u32 %v44, 3
    %v49 = vand.u32 %v45, 3
    %v50 = vand.u32 %v46, 3
    %v51 = vld [vmem:[%s1] sm:$0xff]
    %v52 = vld [vmem:[%s1 + $0x8] sm:$0xff]
    %v53 = vld [vmem:[%s1 + $0x10] sm:$0xff]
    %v54 = vld [vmem:[%s1 + $0x18] sm:$0xff]
    %v55 = vld [vmem:[%s2] sm:$0xff]
    %v56 = vld [vmem:[%s2 + $0x8] sm:$0xff]
    %v57 = vld [vmem:[%s2 + $0x10] sm:$0xff]
    %v58 = vld [vmem:[%s2 + $0x18] sm:$0xff]
    %v59 = vlaneseq
    %v60 = vshrl.u32 %v59, 7
    %v61 = vsub.s32 0, %v60
    %v62 = vrot.slane %v38, %v61
    %vm63 = vcmask 261120
    %v65 = vsel %vm63, %v51, 0
    %v68 = vsel %vm63, %v52, 0
    %v71 = vsel %vm63, %v53, 0
    %v74 = vsel %vm63, %v54, 0
    %76 = vmatprep.subr.mxu0 0.0
    %77 = vmatpush1.msra.mxu0 %v55
    %78 = vmatprep.subr.mxu0 0.0
    %79 = vmatpush1.msra.mxu0 %v56
    %80 = vmatprep.subr.mxu0 0.0
    %81 = vmatpush1.msra.mxu0 %v57
    %82 = vmatprep.subr.mxu0 0.0
    %83 = vmatpush1.msra.mxu0 %v58
    %84 = vmatprep.subr.mxu0 0.0
    %85 = vmatpush1.msra.mxu0 0.0
    %86 = vmatprep.subr.mxu0 0.0
    %87 = vmatpush1.msra.mxu0 0.0
    %88 = vmatprep.subr.mxu0 0.0
    %89 = vmatpush1.msra.mxu0 0.0
    %90 = vmatprep.subr.mxu0 0.0
    %91 = vmatpush1.msra.mxu0 0.0
    %92 = vmatprep.subr.mxu0 0.0
    %93 = vmatpush1.msra.mxu0 0.0
    %94 = vmatprep.subr.mxu0 0.0
    %95 = vmatpush1.msra.mxu0 0.0
    %96 = vmatprep.subr.mxu0 0.0
    %97 = vmatpush1.msra.mxu0 0.0
    %98 = vmatprep.subr.mxu0 0.0
    %99 = vmatpush1.msra.mxu0 0.0
    %100 = vmatprep.subr.mxu0 0.0
    %101 = vmatpush1.msra.mxu0 0.0
    %102 = vmatprep.subr.mxu0 0.0
    %103 = vmatpush1.msra.mxu0 0.0
    %104 = vmatprep.subr.mxu0 0.0
    %105 = vmatpush1.msra.mxu0 0.0
    %106 = vmatprep.subr.mxu0 0.0
    %107 = vmatpush1.msra.mxu0 0.0
    %108 = vmatprep.subr.mxu0 0.0
    %109 = vmatpush1.msra.mxu0 0.0
    %110 = vmatprep.subr.mxu0 0.0
    %111 = vmatpush1.msra.mxu0 0.0
    %112 = vmatprep.subr.mxu0 0.0
    %113 = vmatpush1.msra.mxu0 0.0
    %114 = vmatprep.subr.mxu0 0.0
    %115 = vmatpush1.msra.mxu0 0.0
    %116 = vmatprep.subr.mxu0 0.0
    %117 = vmatpush1.msra.mxu0 0.0
    %118 = vmatprep.subr.mxu0 0.0
    %119 = vmatpush1.msra.mxu0 0.0
    %120 = vmatprep.subr.mxu0 0.0
    %121 = vmatpush1.msra.mxu0 0.0
    %122 = vmatprep.subr.mxu0 0.0
    %123 = vmatpush1.msra.mxu0 0.0
    %124 = vmatprep.subr.mxu0 0.0
    %125 = vmatpush1.msra.mxu0 0.0
    %126 = vmatprep.subr.mxu0 0.0
    %127 = vmatpush1.msra.mxu0 0.0
    %128 = vmatprep.subr.mxu0 0.0
    %129 = vmatpush1.msra.mxu0 0.0
    %130 = vmatprep.subr.mxu0 0.0
    %131 = vmatpush1.msra.mxu0 0.0
    %132 = vmatprep.subr.mxu0 0.0
    %133 = vmatpush1.msra.mxu0 0.0
    %134 = vmatprep.subr.mxu0 0.0
    %135 = vmatpush1.msra.mxu0 0.0
    %136 = vmatprep.subr.mxu0 0.0
    %137 = vmatpush1.msra.mxu0 0.0
    %138 = vmatprep.subr.mxu0 0.0
    %139 = vmatpush1.msra.mxu0 0.0
    %140 = vmatprep.mubr.f32.mxu0 0.0
    %141 = vmatmul.mubr.f32.gmra.mrb[0].mxu0 %v65
    %v142 = vpop.f32.mrb[0].mxu0
    %v143 = vadd.f32 %v62, %v142
    %v144 = vpop.f32.mrb[0].mxu0
    %145 = vmatprep.mubr.f32.mxu0 0.0
    %146 = vmatmul.mubr.f32.gmra.mrb[0].mxu0 %v68
    %v147 = vpop.f32.mrb[0].mxu0
    %v148 = vadd.f32 %v62, %v147
    %v149 = vpop.f32.mrb[0].mxu0
    %150 = vmatprep.mubr.f32.mxu0 0.0
    %151 = vmatmul.mubr.f32.gmra.mrb[0].mxu0 %v71
    %v152 = vpop.f32.mrb[0].mxu0
    %v153 = vadd.f32 %v62, %v152
    %v154 = vpop.f32.mrb[0].mxu0
    %155 = vmatprep.mubr.f32.mxu0 0.0
    %156 = vmatmul.mubr.f32.gmra.mrb[0].mxu0 %v74
    %v157 = vpop.f32.mrb[0].mxu0
    %v158 = vadd.f32 %v62, %v157
    %v159 = vpop.f32.mrb[0].mxu0
    %160 = vdwg.mxu0
    %v161 = vsel %vm63, %v143, 0.0
    %162 = vadd.xlane.f32.xlu0 %v161
    %v163 = vpop.xlane.xlu0 %162
    %v164 = vsel %vm63, %v148, 0.0
    %165 = vadd.xlane.f32.xlu0 %v164
    %v166 = vpop.xlane.xlu0 %165
    %v167 = vsel %vm63, %v153, 0.0
    %168 = vadd.xlane.f32.xlu0 %v167
    %v169 = vpop.xlane.xlu0 %168
    %v170 = vsel %vm63, %v158, 0.0
    %171 = vadd.xlane.f32.xlu0 %v170
    %v172 = vpop.xlane.xlu0 %171
    %v173 = vrcp.pop 32.0
    %v174 = vmul.f32 %v163, %v173
    %v175 = vmul.f32 %v166, %v173
    %v176 = vmul.f32 %v169, %v173
    %v177 = vmul.f32 %v172, %v173
    %v178 = vsub.f32 %v143, %v174
    %v179 = vsub.f32 %v148, %v175
    %v180 = vsub.f32 %v153, %v176
    %v181 = vsub.f32 %v158, %v177
    %v182 = vmul.f32 %v178, %v178
    %v183 = vmul.f32 %v179, %v179
    %v184 = vmul.f32 %v180, %v180
    %v185 = vmul.f32 %v181, %v181
    %v186 = vsel %vm63, %v182, 0.0
    %187 = vadd.xlane.f32.xlu0 %v186
    %v188 = vpop.xlane.xlu0 %187
    %v189 = vsel %vm63, %v183, 0.0
    %190 = vadd.xlane.f32.xlu0 %v189
    %v191 = vpop.xlane.xlu0 %190
    %v192 = vsel %vm63, %v184, 0.0
    %193 = vadd.xlane.f32.xlu0 %v192
    %v194 = vpop.xlane.xlu0 %193
    %v195 = vsel %vm63, %v185, 0.0
    %196 = vadd.xlane.f32.xlu0 %v195
    %v197 = vpop.xlane.xlu0 %196
    %v198 = vmul.f32 %v188, %v173
    %v199 = vmul.f32 %v191, %v173
    %v200 = vmul.f32 %v194, %v173
    %v201 = vmul.f32 %v197, %v173
    %v202 = vadd.f32 %v198, 1e-05
    %v203 = vadd.f32 %v199, 1e-05
    %v204 = vadd.f32 %v200, 1e-05
    %v205 = vadd.f32 %v201, 1e-05
    %v206 = vrsqrt.pop %v202
    %v207 = vrsqrt.pop %v203
    %v208 = vrsqrt.pop %v204
    %v209 = vrsqrt.pop %v205
    %v210 = vmul.f32 %v178, %v206
    %v211 = vmul.f32 %v179, %v207
    %v212 = vmul.f32 %v180, %v208
    %v213 = vmul.f32 %v181, %v209
    %v214 = vlaneseq
    %v215 = vshrl.u32 %v214, 7
    %v216 = vsub.s32 1, %v215
    %v217 = vrot.slane %v38, %v216
    %v218 = vmul.f32 %v210, %v217
    %v219 = vmul.f32 %v211, %v217
    %v220 = vmul.f32 %v212, %v217
    %v221 = vmul.f32 %v213, %v217
    %v222 = vlaneseq
    %v223 = vshrl.u32 %v222, 7
    %v224 = vsub.s32 2, %v223
    %v225 = vrot.slane %v38, %v224
    %v226 = vadd.f32 %v218, %v225
    %v227 = vadd.f32 %v219, %v225
    %v228 = vadd.f32 %v220, %v225
    %v229 = vadd.f32 %v221, %v225
    %v230 = vmax.f32 %v226, 0.0
    %v231 = vmax.f32 %v227, 0.0
    %v232 = vmax.f32 %v228, 0.0
    %v233 = vmax.f32 %v229, 0.0
    %v234 = vld [vmem:[%s3] sm:$0xff]
    %v235 = vld [vmem:[%s3 + $0x8] sm:$0xff]
    %v236 = vld [vmem:[%s3 + $0x10] sm:$0xff]
    %v237 = vld [vmem:[%s3 + $0x18] sm:$0xff]
    %v239 = vsel %vm63, %v230, 0
    %v242 = vsel %vm63, %v231, 0
    %v245 = vsel %vm63, %v232, 0
    %v248 = vsel %vm63, %v233, 0
    %250 = vmatprep.subr.mxu0 0.0
    %251 = vmatpush1.msra.mxu0 %v234
    %252 = vmatprep.subr.mxu0 0.0
    %253 = vmatpush1.msra.mxu0 %v235
    %254 = vmatprep.subr.mxu0 0.0
    %255 = vmatpush1.msra.mxu0 %v236
    %256 = vmatprep.subr.mxu0 0.0
    %257 = vmatpush1.msra.mxu0 %v237
    %258 = vmatprep.subr.mxu0 0.0
    %259 = vmatpush1.msra.mxu0 0.0
    %260 = vmatprep.subr.mxu0 0.0
    %261 = vmatpush1.msra.mxu0 0.0
    %262 = vmatprep.subr.mxu0 0.0
    %263 = vmatpush1.msra.mxu0 0.0
    %264 = vmatprep.subr.mxu0 0.0
    %265 = vmatpush1.msra.mxu0 0.0
    %266 = vmatprep.subr.mxu0 0.0
    %267 = vmatpush1.msra.mxu0 0.0
    %268 = vmatprep.subr.mxu0 0.0
    %269 = vmatpush1.msra.mxu0 0.0
    %270 = vmatprep.subr.mxu0 0.0
    %271 = vmatpush1.msra.mxu0 0.0
    %272 = vmatprep.subr.mxu0 0.0
    %273 = vmatpush1.msra.mxu0 0.0
    %274 = vmatprep.subr.mxu0 0.0
    %275 = vmatpush1.msra.mxu0 0.0
    %276 = vmatprep.subr.mxu0 0.0
    %277 = vmatpush1.msra.mxu0 0.0
    %278 = vmatprep.subr.mxu0 0.0
    %279 = vmatpush1.msra.mxu0 0.0
    %280 = vmatprep.subr.mxu0 0.0
    %281 = vmatpush1.msra.mxu0 0.0
    %282 = vmatprep.subr.mxu0 0.0
    %283 = vmatpush1.msra.mxu0 0.0
    %284 = vmatprep.subr.mxu0 0.0
    %285 = vmatpush1.msra.mxu0 0.0
    %286 = vmatprep.subr.mxu0 0.0
    %287 = vmatpush1.msra.mxu0 0.0
    %288 = vmatprep.subr.mxu0 0.0
    %289 = vmatpush1.msra.mxu0 0.0
    %290 = vmatprep.subr.mxu0 0.0
    %291 = vmatpush1.msra.mxu0 0.0
    %292 = vmatprep.subr.mxu0 0.0
    %293 = vmatpush1.msra.mxu0 0.0
    %294 = vmatprep.subr.mxu0 0.0
    %295 = vmatpush1.msra.mxu0 0.0
    %296 = vmatprep.subr.mxu0 0.0
    %297 = vmatpush1.msra.mxu0 0.0
    %298 = vmatprep.subr.mxu0 0.0
    %299 = vmatpush1.msra.mxu0 0.0
    %300 = vmatprep.subr.mxu0 0.0
    %301 = vmatpush1.msra.mxu0 0.0
    %302 = vmatprep.subr.mxu0 0.0
    %303 = vmatpush1.msra.mxu0 0.0
    %304 = vmatprep.subr.mxu0 0.0
    %305 = vmatpush1.msra.mxu0 0.0
    %306 = vmatprep.subr.mxu0 0.0
    %307 = vmatpush1.msra.mxu0 0.0
    %308 = vmatprep.subr.mxu0 0.0
    %309 = vmatpush1.msra.mxu0 0.0
    %310 = vmatprep.subr.mxu0 0.0
    %311 = vmatpush1.msra.mxu0 0.0
    %312 = vmatprep.subr.mxu0 0.0
    %313 = vmatpush1.msra.mxu0 0.0
    %314 = vmatprep.mubr.f32.mxu0 0.0
    %315 = vmatmul.mubr.f32.gmra.mrb[0].mxu0 %v239
    %v316 = vpop.f32.mrb[0].mxu0
    %v317 = vadd.f32 0.0, %v316
    %v318 = vpop.f32.mrb[0].mxu0
    %319 = vmatprep.mubr.f32.mxu0 0.0
    %320 = vmatmul.mubr.f32.gmra.mrb[0].mxu0 %v242
    %v321 = vpop.f32.mrb[0].mxu0
    %v322 = vadd.f32 0.0, %v321
    %v323 = vpop.f32.mrb[0].mxu0
    %324 = vmatprep.mubr.f32.mxu0 0.0
    %325 = vmatmul.mubr.f32.gmra.mrb[0].mxu0 %v245
    %v326 = vpop.f32.mrb[0].mxu0
    %v327 = vadd.f32 0.0, %v326
    %v328 = vpop.f32.mrb[0].mxu0
    %329 = vmatprep.mubr.f32.mxu0 0.0
    %330 = vmatmul.mubr.f32.gmra.mrb[0].mxu0 %v248
    %v331 = vpop.f32.mrb[0].mxu0
    %v332 = vadd.f32 0.0, %v331
    %v333 = vpop.f32.mrb[0].mxu0
    %334 = vdwg.mxu0
    %v335 = vlaneseq
    %v336 = vshrl.u32 %v335, 7
    %v337 = vsub.s32 3, %v336
    %v338 = vrot.slane %v38, %v337
    %v339 = vadd.f32 %v317, %v338
    %v340 = vadd.f32 %v322, %v338
    %v341 = vadd.f32 %v327, %v338
    %v342 = vadd.f32 %v332, %v338
    %347 = vrot.lane.b32.xlu0 %v317, 96
    %v348 = vpop.permute.xlu0 %347
    %349 = vrot.lane.b32.xlu0 %v322, 96
    %v350 = vpop.permute.xlu0 %349
    %351 = vrot.lane.b32.xlu0 %v327, 96
    %v352 = vpop.permute.xlu0 %351
    %353 = vrot.lane.b32.xlu0 %v332, 96
    %v354 = vpop.permute.xlu0 %353
    %v359 = vrot.slane %v348, 1
    %v360 = vrot.slane %v350, 1
    %v361 = vrot.slane %v352, 1
    %v362 = vrot.slane %v354, 1
    %vm363 = vcmp.lt.s32.totalorder %v43, 7
    %v364 = vsel %vm363, %v361, %v362
    %v365 = vsel %vm363, %v360, %v361
    %v366 = vsel %vm363, %v359, %v360
    %v367 = vsel %vm363, %v362, %v359
    %v368 = vrot.slane %v348, 5
    %v369 = vrot.slane %v350, 5
    %v370 = vrot.slane %v352, 5
    %v371 = vrot.slane %v354, 5
    %vm372 = vcmp.lt.s32.totalorder %v43, 3
    %v373 = vsel %vm372, %v370, %v371
    %v374 = vsel %vm372, %v369, %v370
    %v375 = vsel %vm372, %v368, %v369
    %v376 = vsel %vm372, %v371, %v368
    %vm377 = vcmp.lt.s32.totalorder %v47, 3
    %vm378 = vcmp.lt.s32.totalorder %v48, 3
    %vm379 = vcmp.lt.s32.totalorder %v49, 3
    %vm380 = vcmp.lt.s32.totalorder %v50, 3
    %v381 = vsel %vm377, 1, 0
    %v382 = vsel %vm378, 1, 0
    %v383 = vsel %vm379, 1, 0
    %v384 = vsel %vm380, 1, 0
    %vm385 = vcmp.eq.s32.totalorder %v381, 1
    %vm386 = vcmp.eq.s32.totalorder %v382, 1
    %vm387 = vcmp.eq.s32.totalorder %v383, 1
    %vm388 = vcmp.eq.s32.totalorder %v384, 1
    %v389 = vsel %vm385, %v366, %v376
    %v390 = vsel %vm386, %v365, %v375
    %v391 = vsel %vm387, %v364, %v374
    %v392 = vsel %vm388, %v367, %v373
    %v393 = vadd.f32 %v339, %v389
    %v394 = vadd.f32 %v340, %v390
    %v395 = vadd.f32 %v341, %v391
    %v396 = vadd.f32 %v342, %v392
    %v397 = vrot.slane %v348, 2
    %v398 = vrot.slane %v350, 2
    %v399 = vrot.slane %v352, 2
    %v400 = vrot.slane %v354, 2
    %vm401 = vcmp.lt.s32.totalorder %v43, 6
    %v402 = vsel %vm401, %v399, %v400
    %v403 = vsel %vm401, %v398, %v399
    %v404 = vsel %vm401, %v397, %v398
    %v405 = vsel %vm401, %v400, %v397
    %v406 = vrot.slane %v348, 6
    %v407 = vrot.slane %v350, 6
    %v408 = vrot.slane %v352, 6
    %v409 = vrot.slane %v354, 6
    %vm410 = vcmp.lt.s32.totalorder %v43, 2
    %v411 = vsel %vm410, %v408, %v409
    %v412 = vsel %vm410, %v407, %v408
    %v413 = vsel %vm410, %v406, %v407
    %v414 = vsel %vm410, %v409, %v406
    %vm415 = vcmp.lt.s32.totalorder %v47, 2
    %vm416 = vcmp.lt.s32.totalorder %v48, 2
    %vm417 = vcmp.lt.s32.totalorder %v49, 2
    %vm418 = vcmp.lt.s32.totalorder %v50, 2
    %v419 = vsel %vm415, 1, 0
    %v420 = vsel %vm416, 1, 0
    %v421 = vsel %vm417, 1, 0
    %v422 = vsel %vm418, 1, 0
    %vm423 = vcmp.eq.s32.totalorder %v419, 1
    %vm424 = vcmp.eq.s32.totalorder %v420, 1
    %vm425 = vcmp.eq.s32.totalorder %v421, 1
    %vm426 = vcmp.eq.s32.totalorder %v422, 1
    %v427 = vsel %vm423, %v404, %v414
    %v428 = vsel %vm424, %v403, %v413
    %v429 = vsel %vm425, %v402, %v412
    %v430 = vsel %vm426, %v405, %v411
    %v431 = vadd.f32 %v339, %v427
    %v432 = vadd.f32 %v340, %v428
    %v433 = vadd.f32 %v341, %v429
    %v434 = vadd.f32 %v342, %v430
    %v435 = vrot.slane %v348, 3
    %v436 = vrot.slane %v350, 3
    %v437 = vrot.slane %v352, 3
    %v438 = vrot.slane %v354, 3
    %vm439 = vcmp.lt.s32.totalorder %v43, 5
    %v440 = vsel %vm439, %v437, %v438
    %v441 = vsel %vm439, %v436, %v437
    %v442 = vsel %vm439, %v435, %v436
    %v443 = vsel %vm439, %v438, %v435
    %v444 = vrot.slane %v348, 7
    %v445 = vrot.slane %v350, 7
    %v446 = vrot.slane %v352, 7
    %v447 = vrot.slane %v354, 7
    %vm448 = vcmp.lt.s32.totalorder %v43, 1
    %v449 = vsel %vm448, %v446, %v447
    %v450 = vsel %vm448, %v445, %v446
    %v451 = vsel %vm448, %v444, %v445
    %v452 = vsel %vm448, %v447, %v444
    %vm453 = vcmp.lt.s32.totalorder %v47, 1
    %vm454 = vcmp.lt.s32.totalorder %v48, 1
    %vm455 = vcmp.lt.s32.totalorder %v49, 1
    %vm456 = vcmp.lt.s32.totalorder %v50, 1
    %v457 = vsel %vm453, 1, 0
    %v458 = vsel %vm454, 1, 0
    %v459 = vsel %vm455, 1, 0
    %v460 = vsel %vm456, 1, 0
    %vm461 = vcmp.eq.s32.totalorder %v457, 1
    %vm462 = vcmp.eq.s32.totalorder %v458, 1
    %vm463 = vcmp.eq.s32.totalorder %v459, 1
    %vm464 = vcmp.eq.s32.totalorder %v460, 1
    %v465 = vsel %vm461, %v442, %v452
    %v466 = vsel %vm462, %v441, %v451
    %v467 = vsel %vm463, %v440, %v450
    %v468 = vsel %vm464, %v443, %v449
    %v469 = vadd.f32 %v339, %v465
    %v470 = vadd.f32 %v340, %v466
    %v471 = vadd.f32 %v341, %v467
    %v472 = vadd.f32 %v342, %v468
    %v473 = vsel %vm63, %v393, 0.0
    %474 = vadd.xlane.f32.xlu0 %v473
    %v475 = vpop.xlane.xlu0 %474
    %v476 = vsel %vm63, %v394, 0.0
    %477 = vadd.xlane.f32.xlu0 %v476
    %v478 = vpop.xlane.xlu0 %477
    %v479 = vsel %vm63, %v395, 0.0
    %480 = vadd.xlane.f32.xlu0 %v479
    %v481 = vpop.xlane.xlu0 %480
    %v482 = vsel %vm63, %v396, 0.0
    %483 = vadd.xlane.f32.xlu0 %v482
    %v484 = vpop.xlane.xlu0 %483
    %v485 = vsel %vm63, %v431, 0.0
    %486 = vadd.xlane.f32.xlu0 %v485
    %v487 = vpop.xlane.xlu0 %486
    %v488 = vsel %vm63, %v432, 0.0
    %489 = vadd.xlane.f32.xlu0 %v488
    %v490 = vpop.xlane.xlu0 %489
    %v491 = vsel %vm63, %v433, 0.0
    %492 = vadd.xlane.f32.xlu0 %v491
    %v493 = vpop.xlane.xlu0 %492
    %v494 = vsel %vm63, %v434, 0.0
    %495 = vadd.xlane.f32.xlu0 %v494
    %v496 = vpop.xlane.xlu0 %495
    %v497 = vsel %vm63, %v469, 0.0
    %498 = vadd.xlane.f32.xlu0 %v497
    %v499 = vpop.xlane.xlu0 %498
    %v500 = vsel %vm63, %v470, 0.0
    %501 = vadd.xlane.f32.xlu0 %v500
    %v502 = vpop.xlane.xlu0 %501
    %v503 = vsel %vm63, %v471, 0.0
    %504 = vadd.xlane.f32.xlu0 %v503
    %v505 = vpop.xlane.xlu0 %504
    %v506 = vsel %vm63, %v472, 0.0
    %507 = vadd.xlane.f32.xlu0 %v506
    %v508 = vpop.xlane.xlu0 %507
    %v509 = vmul.f32 %v475, %v173
    %v510 = vmul.f32 %v478, %v173
    %v511 = vmul.f32 %v481, %v173
    %v512 = vmul.f32 %v484, %v173
    %v513 = vmul.f32 %v487, %v173
    %v514 = vmul.f32 %v490, %v173
    %v515 = vmul.f32 %v493, %v173
    %v516 = vmul.f32 %v496, %v173
    %v517 = vmul.f32 %v499, %v173
    %v518 = vmul.f32 %v502, %v173
    %v519 = vmul.f32 %v505, %v173
    %v520 = vmul.f32 %v508, %v173
    %v521 = vsub.f32 %v393, %v509
    %v522 = vsub.f32 %v394, %v510
    %v523 = vsub.f32 %v395, %v511
    %v524 = vsub.f32 %v396, %v512
    %v525 = vsub.f32 %v431, %v513
    %v526 = vsub.f32 %v432, %v514
    %v527 = vsub.f32 %v433, %v515
    %v528 = vsub.f32 %v434, %v516
    %v529 = vsub.f32 %v469, %v517
    %v530 = vsub.f32 %v470, %v518
    %v531 = vsub.f32 %v471, %v519
    %v532 = vsub.f32 %v472, %v520
    %v533 = vmul.f32 %v521, %v521
    %v534 = vmul.f32 %v522, %v522
    %v535 = vmul.f32 %v523, %v523
    %v536 = vmul.f32 %v524, %v524
    %v537 = vmul.f32 %v525, %v525
    %v538 = vmul.f32 %v526, %v526
    %v539 = vmul.f32 %v527, %v527
    %v540 = vmul.f32 %v528, %v528
    %v541 = vmul.f32 %v529, %v529
    %v542 = vmul.f32 %v530, %v530
    %v543 = vmul.f32 %v531, %v531
    %v544 = vmul.f32 %v532, %v532
    %v545 = vsel %vm63, %v533, 0.0
    %546 = vadd.xlane.f32.xlu0 %v545
    %v547 = vpop.xlane.xlu0 %546
    %v548 = vsel %vm63, %v534, 0.0
    %549 = vadd.xlane.f32.xlu0 %v548
    %v550 = vpop.xlane.xlu0 %549
    %v551 = vsel %vm63, %v535, 0.0
    %552 = vadd.xlane.f32.xlu0 %v551
    %v553 = vpop.xlane.xlu0 %552
    %v554 = vsel %vm63, %v536, 0.0
    %555 = vadd.xlane.f32.xlu0 %v554
    %v556 = vpop.xlane.xlu0 %555
    %v557 = vsel %vm63, %v537, 0.0
    %558 = vadd.xlane.f32.xlu0 %v557
    %v559 = vpop.xlane.xlu0 %558
    %v560 = vsel %vm63, %v538, 0.0
    %561 = vadd.xlane.f32.xlu0 %v560
    %v562 = vpop.xlane.xlu0 %561
    %v563 = vsel %vm63, %v539, 0.0
    %564 = vadd.xlane.f32.xlu0 %v563
    %v565 = vpop.xlane.xlu0 %564
    %v566 = vsel %vm63, %v540, 0.0
    %567 = vadd.xlane.f32.xlu0 %v566
    %v568 = vpop.xlane.xlu0 %567
    %v569 = vsel %vm63, %v541, 0.0
    %570 = vadd.xlane.f32.xlu0 %v569
    %v571 = vpop.xlane.xlu0 %570
    %v572 = vsel %vm63, %v542, 0.0
    %573 = vadd.xlane.f32.xlu0 %v572
    %v574 = vpop.xlane.xlu0 %573
    %v575 = vsel %vm63, %v543, 0.0
    %576 = vadd.xlane.f32.xlu0 %v575
    %v577 = vpop.xlane.xlu0 %576
    %v578 = vsel %vm63, %v544, 0.0
    %579 = vadd.xlane.f32.xlu0 %v578
    %v580 = vpop.xlane.xlu0 %579
    %v581 = vmul.f32 %v547, %v173
    %v582 = vmul.f32 %v550, %v173
    %v583 = vmul.f32 %v553, %v173
    %v584 = vmul.f32 %v556, %v173
    %v585 = vmul.f32 %v559, %v173
    %v586 = vmul.f32 %v562, %v173
    %v587 = vmul.f32 %v565, %v173
    %v588 = vmul.f32 %v568, %v173
    %v589 = vmul.f32 %v571, %v173
    %v590 = vmul.f32 %v574, %v173
    %v591 = vmul.f32 %v577, %v173
    %v592 = vmul.f32 %v580, %v173
    %v593 = vadd.f32 %v581, 1e-05
    %v594 = vadd.f32 %v582, 1e-05
    %v595 = vadd.f32 %v583, 1e-05
    %v596 = vadd.f32 %v584, 1e-05
    %v597 = vadd.f32 %v585, 1e-05
    %v598 = vadd.f32 %v586, 1e-05
    %v599 = vadd.f32 %v587, 1e-05
    %v600 = vadd.f32 %v588, 1e-05
    %v601 = vadd.f32 %v589, 1e-05
    %v602 = vadd.f32 %v590, 1e-05
    %v603 = vadd.f32 %v591, 1e-05
    %v604 = vadd.f32 %v592, 1e-05
    %v605 = vrsqrt.pop %v593
    %v606 = vrsqrt.pop %v594
    %v607 = vrsqrt.pop %v595
    %v608 = vrsqrt.pop %v596
    %v609 = vrsqrt.pop %v597
    %v610 = vrsqrt.pop %v598
    %v611 = vrsqrt.pop %v599
    %v612 = vrsqrt.pop %v600
    %v613 = vrsqrt.pop %v601
    %v614 = vrsqrt.pop %v602
    %v615 = vrsqrt.pop %v603
    %v616 = vrsqrt.pop %v604
    %v617 = vmul.f32 %v521, %v605
    %v618 = vmul.f32 %v522, %v606
    %v619 = vmul.f32 %v523, %v607
    %v620 = vmul.f32 %v524, %v608
    %v621 = vmul.f32 %v525, %v609
    %v622 = vmul.f32 %v526, %v610
    %v623 = vmul.f32 %v527, %v611
    %v624 = vmul.f32 %v528, %v612
    %v625 = vmul.f32 %v529, %v613
    %v626 = vmul.f32 %v530, %v614
    %v627 = vmul.f32 %v531, %v615
    %v628 = vmul.f32 %v532, %v616
    %v629 = vlaneseq
    %v630 = vshrl.u32 %v629, 7
    %v631 = vsub.s32 4, %v630
    %v632 = vrot.slane %v38, %v631
    %v633 = vmul.f32 %v617, %v632
    %v634 = vmul.f32 %v618, %v632
    %v635 = vmul.f32 %v619, %v632
    %v636 = vmul.f32 %v620, %v632
    %v637 = vmul.f32 %v621, %v632
    %v638 = vmul.f32 %v622, %v632
    %v639 = vmul.f32 %v623, %v632
    %v640 = vmul.f32 %v624, %v632
    %v641 = vmul.f32 %v625, %v632
    %v642 = vmul.f32 %v626, %v632
    %v643 = vmul.f32 %v627, %v632
    %v644 = vmul.f32 %v628, %v632
    %v645 = vlaneseq
    %v646 = vshrl.u32 %v645, 7
    %v647 = vsub.s32 5, %v646
    %v648 = vrot.slane %v38, %v647
    %v649 = vadd.f32 %v633, %v648
    %v650 = vadd.f32 %v634, %v648
    %v651 = vadd.f32 %v635, %v648
    %v652 = vadd.f32 %v636, %v648
    %v653 = vadd.f32 %v637, %v648
    %v654 = vadd.f32 %v638, %v648
    %v655 = vadd.f32 %v639, %v648
    %v656 = vadd.f32 %v640, %v648
    %v657 = vadd.f32 %v641, %v648
    %v658 = vadd.f32 %v642, %v648
    %v659 = vadd.f32 %v643, %v648
    %v660 = vadd.f32 %v644, %v648
    %v661 = vmax.f32 %v649, 0.0
    %v662 = vmax.f32 %v650, 0.0
    %v663 = vmax.f32 %v651, 0.0
    %v664 = vmax.f32 %v652, 0.0
    %v665 = vmax.f32 %v653, 0.0
    %v666 = vmax.f32 %v654, 0.0
    %v667 = vmax.f32 %v655, 0.0
    %v668 = vmax.f32 %v656, 0.0
    %v669 = vmax.f32 %v657, 0.0
    %v670 = vmax.f32 %v658, 0.0
    %v671 = vmax.f32 %v659, 0.0
    %v672 = vmax.f32 %v660, 0.0
    %v673 = vld [vmem:[%s4] sm:$0xff]
    %v674 = vld [vmem:[%s4 + $0x8] sm:$0xff]
    %v675 = vld [vmem:[%s4 + $0x10] sm:$0xff]
    %v676 = vld [vmem:[%s4 + $0x18] sm:$0xff]
    %v677 = vld [vmem:[%s4 + $0x20] sm:$0xff]
    %v678 = vld [vmem:[%s4 + $0x28] sm:$0xff]
    %v679 = vld [vmem:[%s4 + $0x30] sm:$0xff]
    %v680 = vld [vmem:[%s4 + $0x38] sm:$0xff]
    %v682 = vsel %vm63, %v661, 0
    %v685 = vsel %vm63, %v662, 0
    %v688 = vsel %vm63, %v663, 0
    %v691 = vsel %vm63, %v664, 0
    %v694 = vsel %vm63, %v665, 0
    %v697 = vsel %vm63, %v666, 0
    %v700 = vsel %vm63, %v667, 0
    %v703 = vsel %vm63, %v668, 0
    %v706 = vsel %vm63, %v669, 0
    %v709 = vsel %vm63, %v670, 0
    %v712 = vsel %vm63, %v671, 0
    %v715 = vsel %vm63, %v672, 0
    %717 = vmatprep.subr.mxu0 %v674
    %718 = vmatpush1.msra.mxu0 %v673
    %719 = vmatprep.subr.mxu0 %v676
    %720 = vmatpush1.msra.mxu0 %v675
    %721 = vmatprep.subr.mxu0 %v678
    %722 = vmatpush1.msra.mxu0 %v677
    %723 = vmatprep.subr.mxu0 %v680
    %724 = vmatpush1.msra.mxu0 %v679
    %725 = vmatprep.subr.mxu0 0.0
    %726 = vmatpush1.msra.mxu0 0.0
    %727 = vmatprep.subr.mxu0 0.0
    %728 = vmatpush1.msra.mxu0 0.0
    %729 = vmatprep.subr.mxu0 0.0
    %730 = vmatpush1.msra.mxu0 0.0
    %731 = vmatprep.subr.mxu0 0.0
    %732 = vmatpush1.msra.mxu0 0.0
    %733 = vmatprep.subr.mxu0 0.0
    %734 = vmatpush1.msra.mxu0 0.0
    %735 = vmatprep.subr.mxu0 0.0
    %736 = vmatpush1.msra.mxu0 0.0
    %737 = vmatprep.subr.mxu0 0.0
    %738 = vmatpush1.msra.mxu0 0.0
    %739 = vmatprep.subr.mxu0 0.0
    %740 = vmatpush1.msra.mxu0 0.0
    %741 = vmatprep.subr.mxu0 0.0
    %742 = vmatpush1.msra.mxu0 0.0
    %743 = vmatprep.subr.mxu0 0.0
    %744 = vmatpush1.msra.mxu0 0.0
    %745 = vmatprep.subr.mxu0 0.0
    %746 = vmatpush1.msra.mxu0 0.0
    %747 = vmatprep.subr.mxu0 0.0
    %748 = vmatpush1.msra.mxu0 0.0
    %749 = vmatprep.subr.mxu0 0.0
    %750 = vmatpush1.msra.mxu0 0.0
    %751 = vmatprep.subr.mxu0 0.0
    %752 = vmatpush1.msra.mxu0 0.0
    %753 = vmatprep.subr.mxu0 0.0
    %754 = vmatpush1.msra.mxu0 0.0
    %755 = vmatprep.subr.mxu0 0.0
    %756 = vmatpush1.msra.mxu0 0.0
    %757 = vmatprep.subr.mxu0 0.0
    %758 = vmatpush1.msra.mxu0 0.0
    %759 = vmatprep.subr.mxu0 0.0
    %760 = vmatpush1.msra.mxu0 0.0
    %761 = vmatprep.subr.mxu0 0.0
    %762 = vmatpush1.msra.mxu0 0.0
    %763 = vmatprep.subr.mxu0 0.0
    %764 = vmatpush1.msra.mxu0 0.0
    %765 = vmatprep.subr.mxu0 0.0
    %766 = vmatpush1.msra.mxu0 0.0
    %767 = vmatprep.subr.mxu0 0.0
    %768 = vmatpush1.msra.mxu0 0.0
    %769 = vmatprep.subr.mxu0 0.0
    %770 = vmatpush1.msra.mxu0 0.0
    %771 = vmatprep.subr.mxu0 0.0
    %772 = vmatpush1.msra.mxu0 0.0
    %773 = vmatprep.subr.mxu0 0.0
    %774 = vmatpush1.msra.mxu0 0.0
    %775 = vmatprep.subr.mxu0 0.0
    %776 = vmatpush1.msra.mxu0 0.0
    %777 = vmatprep.subr.mxu0 0.0
    %778 = vmatpush1.msra.mxu0 0.0
    %779 = vmatprep.subr.mxu0 0.0
    %780 = vmatpush1.msra.mxu0 0.0
    %781 = vmatprep.mubr.f32.mxu0 0.0
    %782 = vmatmul.mubr.f32.gmra.mrb[0].mxu0 %v682
    %v783 = vpop.f32.mrb[0].mxu0
    %v784 = vadd.f32 0.0, %v783
    %v785 = vpop.f32.mrb[0].mxu0
    %v786 = vadd.f32 0.0, %v785
    %787 = vmatprep.mubr.f32.mxu0 0.0
    %788 = vmatmul.mubr.f32.gmra.mrb[0].mxu0 %v685
    %v789 = vpop.f32.mrb[0].mxu0
    %v790 = vadd.f32 0.0, %v789
    %v791 = vpop.f32.mrb[0].mxu0
    %v792 = vadd.f32 0.0, %v791
    %793 = vmatprep.mubr.f32.mxu0 0.0
    %794 = vmatmul.mubr.f32.gmra.mrb[0].mxu0 %v688
    %v795 = vpop.f32.mrb[0].mxu0
    %v796 = vadd.f32 0.0, %v795
    %v797 = vpop.f32.mrb[0].mxu0
    %v798 = vadd.f32 0.0, %v797
    %799 = vmatprep.mubr.f32.mxu0 0.0
    %800 = vmatmul.mubr.f32.gmra.mrb[0].mxu0 %v691
    %v801 = vpop.f32.mrb[0].mxu0
    %v802 = vadd.f32 0.0, %v801
    %v803 = vpop.f32.mrb[0].mxu0
    %v804 = vadd.f32 0.0, %v803
    %805 = vmatprep.mubr.f32.mxu0 0.0
    %806 = vmatmul.mubr.f32.gmra.mrb[0].mxu0 %v694
    %v807 = vpop.f32.mrb[0].mxu0
    %v808 = vadd.f32 0.0, %v807
    %v809 = vpop.f32.mrb[0].mxu0
    %v810 = vadd.f32 0.0, %v809
    %811 = vmatprep.mubr.f32.mxu0 0.0
    %812 = vmatmul.mubr.f32.gmra.mrb[0].mxu0 %v697
    %v813 = vpop.f32.mrb[0].mxu0
    %v814 = vadd.f32 0.0, %v813
    %v815 = vpop.f32.mrb[0].mxu0
    %v816 = vadd.f32 0.0, %v815
    %817 = vmatprep.mubr.f32.mxu0 0.0
    %818 = vmatmul.mubr.f32.gmra.mrb[0].mxu0 %v700
    %v819 = vpop.f32.mrb[0].mxu0
    %v820 = vadd.f32 0.0, %v819
    %v821 = vpop.f32.mrb[0].mxu0
    %v822 = vadd.f32 0.0, %v821
    %823 = vmatprep.mubr.f32.mxu0 0.0
    %824 = vmatmul.mubr.f32.gmra.mrb[0].mxu0 %v703
    %v825 = vpop.f32.mrb[0].mxu0
    %v826 = vadd.f32 0.0, %v825
    %v827 = vpop.f32.mrb[0].mxu0
    %v828 = vadd.f32 0.0, %v827
    %829 = vmatprep.mubr.f32.mxu0 0.0
    %830 = vmatmul.mubr.f32.gmra.mrb[0].mxu0 %v706
    %v831 = vpop.f32.mrb[0].mxu0
    %v832 = vadd.f32 0.0, %v831
    %v833 = vpop.f32.mrb[0].mxu0
    %v834 = vadd.f32 0.0, %v833
    %835 = vmatprep.mubr.f32.mxu0 0.0
    %836 = vmatmul.mubr.f32.gmra.mrb[0].mxu0 %v709
    %v837 = vpop.f32.mrb[0].mxu0
    %v838 = vadd.f32 0.0, %v837
    %v839 = vpop.f32.mrb[0].mxu0
    %v840 = vadd.f32 0.0, %v839
    %841 = vmatprep.mubr.f32.mxu0 0.0
    %842 = vmatmul.mubr.f32.gmra.mrb[0].mxu0 %v712
    %v843 = vpop.f32.mrb[0].mxu0
    %v844 = vadd.f32 0.0, %v843
    %v845 = vpop.f32.mrb[0].mxu0
    %v846 = vadd.f32 0.0, %v845
    %847 = vmatprep.mubr.f32.mxu0 0.0
    %848 = vmatmul.mubr.f32.gmra.mrb[0].mxu0 %v715
    %v849 = vpop.f32.mrb[0].mxu0
    %v850 = vadd.f32 0.0, %v849
    %v851 = vpop.f32.mrb[0].mxu0
    %v852 = vadd.f32 0.0, %v851
    %853 = vdwg.mxu0
    %v854 = vlaneseq
    %v855 = vshrl.u32 %v854, 7
    %v856 = vsub.s32 6, %v855
    %v857 = vrot.slane %v38, %v856
    %v858 = vadd.f32 %v784, %v857
    %v859 = vadd.f32 %v790, %v857
    %v860 = vadd.f32 %v796, %v857
    %v861 = vadd.f32 %v802, %v857
    %v862 = vadd.f32 %v808, %v857
    %v863 = vadd.f32 %v814, %v857
    %v864 = vadd.f32 %v820, %v857
    %v865 = vadd.f32 %v826, %v857
    %v866 = vadd.f32 %v832, %v857
    %v867 = vadd.f32 %v838, %v857
    %v868 = vadd.f32 %v844, %v857
    %v869 = vadd.f32 %v850, %v857
    %v870 = vsel %vm63, %v858, 0.0
    %871 = vadd.xlane.f32.xlu0 %v870
    %v872 = vpop.xlane.xlu0 %871
    %v873 = vsel %vm63, %v859, 0.0
    %874 = vadd.xlane.f32.xlu0 %v873
    %v875 = vpop.xlane.xlu0 %874
    %v876 = vsel %vm63, %v860, 0.0
    %877 = vadd.xlane.f32.xlu0 %v876
    %v878 = vpop.xlane.xlu0 %877
    %v879 = vsel %vm63, %v861, 0.0
    %880 = vadd.xlane.f32.xlu0 %v879
    %v881 = vpop.xlane.xlu0 %880
    %v882 = vsel %vm63, %v862, 0.0
    %883 = vadd.xlane.f32.xlu0 %v882
    %v884 = vpop.xlane.xlu0 %883
    %v885 = vsel %vm63, %v863, 0.0
    %886 = vadd.xlane.f32.xlu0 %v885
    %v887 = vpop.xlane.xlu0 %886
    %v888 = vsel %vm63, %v864, 0.0
    %889 = vadd.xlane.f32.xlu0 %v888
    %v890 = vpop.xlane.xlu0 %889
    %v891 = vsel %vm63, %v865, 0.0
    %892 = vadd.xlane.f32.xlu0 %v891
    %v893 = vpop.xlane.xlu0 %892
    %v894 = vsel %vm63, %v866, 0.0
    %895 = vadd.xlane.f32.xlu0 %v894
    %v896 = vpop.xlane.xlu0 %895
    %v897 = vsel %vm63, %v867, 0.0
    %898 = vadd.xlane.f32.xlu0 %v897
    %v899 = vpop.xlane.xlu0 %898
    %v900 = vsel %vm63, %v868, 0.0
    %901 = vadd.xlane.f32.xlu0 %v900
    %v902 = vpop.xlane.xlu0 %901
    %v903 = vsel %vm63, %v869, 0.0
    %904 = vadd.xlane.f32.xlu0 %v903
    %v905 = vpop.xlane.xlu0 %904
    %v906 = vmul.f32 %v872, %v173
    %v907 = vmul.f32 %v875, %v173
    %v908 = vmul.f32 %v878, %v173
    %v909 = vmul.f32 %v881, %v173
    %v910 = vmul.f32 %v884, %v173
    %v911 = vmul.f32 %v887, %v173
    %v912 = vmul.f32 %v890, %v173
    %v913 = vmul.f32 %v893, %v173
    %v914 = vmul.f32 %v896, %v173
    %v915 = vmul.f32 %v899, %v173
    %v916 = vmul.f32 %v902, %v173
    %v917 = vmul.f32 %v905, %v173
    %v918 = vsub.f32 %v858, %v906
    %v919 = vsub.f32 %v859, %v907
    %v920 = vsub.f32 %v860, %v908
    %v921 = vsub.f32 %v861, %v909
    %v922 = vsub.f32 %v862, %v910
    %v923 = vsub.f32 %v863, %v911
    %v924 = vsub.f32 %v864, %v912
    %v925 = vsub.f32 %v865, %v913
    %v926 = vsub.f32 %v866, %v914
    %v927 = vsub.f32 %v867, %v915
    %v928 = vsub.f32 %v868, %v916
    %v929 = vsub.f32 %v869, %v917
    %v930 = vmul.f32 %v918, %v918
    %v931 = vmul.f32 %v919, %v919
    %v932 = vmul.f32 %v920, %v920
    %v933 = vmul.f32 %v921, %v921
    %v934 = vmul.f32 %v922, %v922
    %v935 = vmul.f32 %v923, %v923
    %v936 = vmul.f32 %v924, %v924
    %v937 = vmul.f32 %v925, %v925
    %v938 = vmul.f32 %v926, %v926
    %v939 = vmul.f32 %v927, %v927
    %v940 = vmul.f32 %v928, %v928
    %v941 = vmul.f32 %v929, %v929
    %v942 = vsel %vm63, %v930, 0.0
    %943 = vadd.xlane.f32.xlu0 %v942
    %v944 = vpop.xlane.xlu0 %943
    %v945 = vsel %vm63, %v931, 0.0
    %946 = vadd.xlane.f32.xlu0 %v945
    %v947 = vpop.xlane.xlu0 %946
    %v948 = vsel %vm63, %v932, 0.0
    %949 = vadd.xlane.f32.xlu0 %v948
    %v950 = vpop.xlane.xlu0 %949
    %v951 = vsel %vm63, %v933, 0.0
    %952 = vadd.xlane.f32.xlu0 %v951
    %v953 = vpop.xlane.xlu0 %952
    %v954 = vsel %vm63, %v934, 0.0
    %955 = vadd.xlane.f32.xlu0 %v954
    %v956 = vpop.xlane.xlu0 %955
    %v957 = vsel %vm63, %v935, 0.0
    %958 = vadd.xlane.f32.xlu0 %v957
    %v959 = vpop.xlane.xlu0 %958
    %v960 = vsel %vm63, %v936, 0.0
    %961 = vadd.xlane.f32.xlu0 %v960
    %v962 = vpop.xlane.xlu0 %961
    %v963 = vsel %vm63, %v937, 0.0
    %964 = vadd.xlane.f32.xlu0 %v963
    %v965 = vpop.xlane.xlu0 %964
    %v966 = vsel %vm63, %v938, 0.0
    %967 = vadd.xlane.f32.xlu0 %v966
    %v968 = vpop.xlane.xlu0 %967
    %v969 = vsel %vm63, %v939, 0.0
    %970 = vadd.xlane.f32.xlu0 %v969
    %v971 = vpop.xlane.xlu0 %970
    %v972 = vsel %vm63, %v940, 0.0
    %973 = vadd.xlane.f32.xlu0 %v972
    %v974 = vpop.xlane.xlu0 %973
    %v975 = vsel %vm63, %v941, 0.0
    %976 = vadd.xlane.f32.xlu0 %v975
    %v977 = vpop.xlane.xlu0 %976
    %v978 = vmul.f32 %v944, %v173
    %v979 = vmul.f32 %v947, %v173
    %v980 = vmul.f32 %v950, %v173
    %v981 = vmul.f32 %v953, %v173
    %v982 = vmul.f32 %v956, %v173
    %v983 = vmul.f32 %v959, %v173
    %v984 = vmul.f32 %v962, %v173
    %v985 = vmul.f32 %v965, %v173
    %v986 = vmul.f32 %v968, %v173
    %v987 = vmul.f32 %v971, %v173
    %v988 = vmul.f32 %v974, %v173
    %v989 = vmul.f32 %v977, %v173
    %v990 = vadd.f32 %v978, 1e-05
    %v991 = vadd.f32 %v979, 1e-05
    %v992 = vadd.f32 %v980, 1e-05
    %v993 = vadd.f32 %v981, 1e-05
    %v994 = vadd.f32 %v982, 1e-05
    %v995 = vadd.f32 %v983, 1e-05
    %v996 = vadd.f32 %v984, 1e-05
    %v997 = vadd.f32 %v985, 1e-05
    %v998 = vadd.f32 %v986, 1e-05
    %v999 = vadd.f32 %v987, 1e-05
    %v1000 = vadd.f32 %v988, 1e-05
    %v1001 = vadd.f32 %v989, 1e-05
    %v1002 = vrsqrt.pop %v990
    %v1003 = vrsqrt.pop %v991
    %v1004 = vrsqrt.pop %v992
    %v1005 = vrsqrt.pop %v993
    %v1006 = vrsqrt.pop %v994
    %v1007 = vrsqrt.pop %v995
    %v1008 = vrsqrt.pop %v996
    %v1009 = vrsqrt.pop %v997
    %v1010 = vrsqrt.pop %v998
    %v1011 = vrsqrt.pop %v999
    %v1012 = vrsqrt.pop %v1000
    %v1013 = vrsqrt.pop %v1001
    %v1014 = vmul.f32 %v918, %v1002
    %v1015 = vmul.f32 %v919, %v1003
    %v1016 = vmul.f32 %v920, %v1004
    %v1017 = vmul.f32 %v921, %v1005
    %v1018 = vmul.f32 %v922, %v1006
    %v1019 = vmul.f32 %v923, %v1007
    %v1020 = vmul.f32 %v924, %v1008
    %v1021 = vmul.f32 %v925, %v1009
    %v1022 = vmul.f32 %v926, %v1010
    %v1023 = vmul.f32 %v927, %v1011
    %v1024 = vmul.f32 %v928, %v1012
    %v1025 = vmul.f32 %v929, %v1013
    %v1026 = vlaneseq
    %v1027 = vshrl.u32 %v1026, 7
    %v1028 = vsub.s32 7, %v1027
    %v1029 = vrot.slane %v38, %v1028
    %v1030 = vmul.f32 %v1014, %v1029
    %v1031 = vmul.f32 %v1015, %v1029
    %v1032 = vmul.f32 %v1016, %v1029
    %v1033 = vmul.f32 %v1017, %v1029
    %v1034 = vmul.f32 %v1018, %v1029
    %v1035 = vmul.f32 %v1019, %v1029
    %v1036 = vmul.f32 %v1020, %v1029
    %v1037 = vmul.f32 %v1021, %v1029
    %v1038 = vmul.f32 %v1022, %v1029
    %v1039 = vmul.f32 %v1023, %v1029
    %v1040 = vmul.f32 %v1024, %v1029
    %v1041 = vmul.f32 %v1025, %v1029
    %v1042 = vlaneseq
    %v1043 = vshrl.u32 %v1042, 7
    %v1044 = vsub.s32 0, %v1043
    %v1045 = vrot.slane %v39, %v1044
    %v1046 = vadd.f32 %v1030, %v1045
    %v1047 = vadd.f32 %v1031, %v1045
    %v1048 = vadd.f32 %v1032, %v1045
    %v1049 = vadd.f32 %v1033, %v1045
    %v1050 = vadd.f32 %v1034, %v1045
    %v1051 = vadd.f32 %v1035, %v1045
    %v1052 = vadd.f32 %v1036, %v1045
    %v1053 = vadd.f32 %v1037, %v1045
    %v1054 = vadd.f32 %v1038, %v1045
    %v1055 = vadd.f32 %v1039, %v1045
    %v1056 = vadd.f32 %v1040, %v1045
    %v1057 = vadd.f32 %v1041, %v1045
    %v1058 = vmax.f32 %v1046, 0.0
    %v1059 = vmax.f32 %v1047, 0.0
    %v1060 = vmax.f32 %v1048, 0.0
    %v1061 = vmax.f32 %v1049, 0.0
    %v1062 = vmax.f32 %v1050, 0.0
    %v1063 = vmax.f32 %v1051, 0.0
    %v1064 = vmax.f32 %v1052, 0.0
    %v1065 = vmax.f32 %v1053, 0.0
    %v1066 = vmax.f32 %v1054, 0.0
    %v1067 = vmax.f32 %v1055, 0.0
    %v1068 = vmax.f32 %v1056, 0.0
    %v1069 = vmax.f32 %v1057, 0.0
    %v1070 = vlaneseq
    %v1071 = vshrl.u32 %v1070, 7
    %v1072 = vsub.s32 0, %v1071
    %v1073 = vrot.slane %v40, %v1072
    %1075 = vrot.lane.b32.xlu0 %v1073, 32
    %v1076 = vpop.permute.xlu0 %1075
    %v1078 = vadd.f32 %v784, %v1076
    %v1079 = vadd.f32 %v786, %v1076
    %v1080 = vadd.f32 %v790, %v1076
    %v1081 = vadd.f32 %v792, %v1076
    %v1082 = vadd.f32 %v796, %v1076
    %v1083 = vadd.f32 %v798, %v1076
    %v1084 = vadd.f32 %v802, %v1076
    %v1085 = vadd.f32 %v804, %v1076
    %v1086 = vadd.f32 %v808, %v1076
    %v1087 = vadd.f32 %v810, %v1076
    %v1088 = vadd.f32 %v814, %v1076
    %v1089 = vadd.f32 %v816, %v1076
    %v1090 = vadd.f32 %v820, %v1076
    %v1091 = vadd.f32 %v822, %v1076
    %v1092 = vadd.f32 %v826, %v1076
    %v1093 = vadd.f32 %v828, %v1076
    %v1094 = vadd.f32 %v832, %v1076
    %v1095 = vadd.f32 %v834, %v1076
    %v1096 = vadd.f32 %v838, %v1076
    %v1097 = vadd.f32 %v840, %v1076
    %v1098 = vadd.f32 %v844, %v1076
    %v1099 = vadd.f32 %v846, %v1076
    %v1100 = vadd.f32 %v850, %v1076
    %v1101 = vadd.f32 %v852, %v1076
    %1126 = vrot.lane.b32.xlu0 %v1078, 96
    %v1127 = vpop.permute.xlu0 %1126
    %1128 = vrot.lane.b32.xlu0 %v1079, 96
    %v1129 = vpop.permute.xlu0 %1128
    %1130 = vrot.lane.b32.xlu0 %v1080, 96
    %v1131 = vpop.permute.xlu0 %1130
    %1132 = vrot.lane.b32.xlu0 %v1081, 96
    %v1133 = vpop.permute.xlu0 %1132
    %1134 = vrot.lane.b32.xlu0 %v1082, 96
    %v1135 = vpop.permute.xlu0 %1134
    %1136 = vrot.lane.b32.xlu0 %v1083, 96
    %v1137 = vpop.permute.xlu0 %1136
    %1138 = vrot.lane.b32.xlu0 %v1084, 96
    %v1139 = vpop.permute.xlu0 %1138
    %1140 = vrot.lane.b32.xlu0 %v1085, 96
    %v1141 = vpop.permute.xlu0 %1140
    %1142 = vrot.lane.b32.xlu0 %v1086, 96
    %v1143 = vpop.permute.xlu0 %1142
    %1144 = vrot.lane.b32.xlu0 %v1087, 96
    %v1145 = vpop.permute.xlu0 %1144
    %1146 = vrot.lane.b32.xlu0 %v1088, 96
    %v1147 = vpop.permute.xlu0 %1146
    %1148 = vrot.lane.b32.xlu0 %v1089, 96
    %v1149 = vpop.permute.xlu0 %1148
    %1150 = vrot.lane.b32.xlu0 %v1090, 96
    %v1151 = vpop.permute.xlu0 %1150
    %1152 = vrot.lane.b32.xlu0 %v1091, 96
    %v1153 = vpop.permute.xlu0 %1152
    %1154 = vrot.lane.b32.xlu0 %v1092, 96
    %v1155 = vpop.permute.xlu0 %1154
    %1156 = vrot.lane.b32.xlu0 %v1093, 96
    %v1157 = vpop.permute.xlu0 %1156
    %1158 = vrot.lane.b32.xlu0 %v1094, 96
    %v1159 = vpop.permute.xlu0 %1158
    %1160 = vrot.lane.b32.xlu0 %v1095, 96
    %v1161 = vpop.permute.xlu0 %1160
    %1162 = vrot.lane.b32.xlu0 %v1096, 96
    %v1163 = vpop.permute.xlu0 %1162
    %1164 = vrot.lane.b32.xlu0 %v1097, 96
    %v1165 = vpop.permute.xlu0 %1164
    %1166 = vrot.lane.b32.xlu0 %v1098, 96
    %v1167 = vpop.permute.xlu0 %1166
    %1168 = vrot.lane.b32.xlu0 %v1099, 96
    %v1169 = vpop.permute.xlu0 %1168
    %1170 = vrot.lane.b32.xlu0 %v1100, 96
    %v1171 = vpop.permute.xlu0 %1170
    %1172 = vrot.lane.b32.xlu0 %v1101, 96
    %v1173 = vpop.permute.xlu0 %1172
    %vm1174 = vcmask 785408
    %v1175 = vsel %vm1174, %v1127, %v1129
    %v1176 = vsel %vm1174, %v1131, %v1133
    %v1177 = vsel %vm1174, %v1135, %v1137
    %v1178 = vsel %vm1174, %v1139, %v1141
    %v1179 = vsel %vm1174, %v1143, %v1145
    %v1180 = vsel %vm1174, %v1147, %v1149
    %v1181 = vsel %vm1174, %v1151, %v1153
    %v1182 = vsel %vm1174, %v1155, %v1157
    %v1183 = vsel %vm1174, %v1159, %v1161
    %v1184 = vsel %vm1174, %v1163, %v1165
    %v1185 = vsel %vm1174, %v1167, %v1169
    %v1186 = vsel %vm1174, %v1171, %v1173
    %vm1199 = vcmask 818176
    %v1200 = vsel %vm1199, %v1175, 0.0
    %1201 = vadd.xlane.f32.xlu0 %v1200
    %v1202 = vpop.xlane.xlu0 %1201
    %v1203 = vsel %vm1199, %v1176, 0.0
    %1204 = vadd.xlane.f32.xlu0 %v1203
    %v1205 = vpop.xlane.xlu0 %1204
    %v1206 = vsel %vm1199, %v1177, 0.0
    %1207 = vadd.xlane.f32.xlu0 %v1206
    %v1208 = vpop.xlane.xlu0 %1207
    %v1209 = vsel %vm1199, %v1178, 0.0
    %1210 = vadd.xlane.f32.xlu0 %v1209
    %v1211 = vpop.xlane.xlu0 %1210
    %v1212 = vsel %vm1199, %v1179, 0.0
    %1213 = vadd.xlane.f32.xlu0 %v1212
    %v1214 = vpop.xlane.xlu0 %1213
    %v1215 = vsel %vm1199, %v1180, 0.0
    %1216 = vadd.xlane.f32.xlu0 %v1215
    %v1217 = vpop.xlane.xlu0 %1216
    %v1218 = vsel %vm1199, %v1181, 0.0
    %1219 = vadd.xlane.f32.xlu0 %v1218
    %v1220 = vpop.xlane.xlu0 %1219
    %v1221 = vsel %vm1199, %v1182, 0.0
    %1222 = vadd.xlane.f32.xlu0 %v1221
    %v1223 = vpop.xlane.xlu0 %1222
    %v1224 = vsel %vm1199, %v1183, 0.0
    %1225 = vadd.xlane.f32.xlu0 %v1224
    %v1226 = vpop.xlane.xlu0 %1225
    %v1227 = vsel %vm1199, %v1184, 0.0
    %1228 = vadd.xlane.f32.xlu0 %v1227
    %v1229 = vpop.xlane.xlu0 %1228
    %v1230 = vsel %vm1199, %v1185, 0.0
    %1231 = vadd.xlane.f32.xlu0 %v1230
    %v1232 = vpop.xlane.xlu0 %1231
    %v1233 = vsel %vm1199, %v1186, 0.0
    %1234 = vadd.xlane.f32.xlu0 %v1233
    %v1235 = vpop.xlane.xlu0 %1234
    %v1236 = vrcp.pop 100.0
    %v1237 = vmul.f32 %v1202, %v1236
    %v1238 = vmul.f32 %v1205, %v1236
    %v1239 = vmul.f32 %v1208, %v1236
    %v1240 = vmul.f32 %v1211, %v1236
    %v1241 = vmul.f32 %v1214, %v1236
    %v1242 = vmul.f32 %v1217, %v1236
    %v1243 = vmul.f32 %v1220, %v1236
    %v1244 = vmul.f32 %v1223, %v1236
    %v1245 = vmul.f32 %v1226, %v1236
    %v1246 = vmul.f32 %v1229, %v1236
    %v1247 = vmul.f32 %v1232, %v1236
    %v1248 = vmul.f32 %v1235, %v1236
    %v1249 = vsub.f32 %v1078, %v1237
    %v1250 = vsub.f32 %v1079, %v1237
    %v1251 = vsub.f32 %v1080, %v1238
    %v1252 = vsub.f32 %v1081, %v1238
    %v1253 = vsub.f32 %v1082, %v1239
    %v1254 = vsub.f32 %v1083, %v1239
    %v1255 = vsub.f32 %v1084, %v1240
    %v1256 = vsub.f32 %v1085, %v1240
    %v1257 = vsub.f32 %v1086, %v1241
    %v1258 = vsub.f32 %v1087, %v1241
    %v1259 = vsub.f32 %v1088, %v1242
    %v1260 = vsub.f32 %v1089, %v1242
    %v1261 = vsub.f32 %v1090, %v1243
    %v1262 = vsub.f32 %v1091, %v1243
    %v1263 = vsub.f32 %v1092, %v1244
    %v1264 = vsub.f32 %v1093, %v1244
    %v1265 = vsub.f32 %v1094, %v1245
    %v1266 = vsub.f32 %v1095, %v1245
    %v1267 = vsub.f32 %v1096, %v1246
    %v1268 = vsub.f32 %v1097, %v1246
    %v1269 = vsub.f32 %v1098, %v1247
    %v1270 = vsub.f32 %v1099, %v1247
    %v1271 = vsub.f32 %v1100, %v1248
    %v1272 = vsub.f32 %v1101, %v1248
    %v1273 = vmul.f32 %v1249, %v1249
    %v1274 = vmul.f32 %v1250, %v1250
    %v1275 = vmul.f32 %v1251, %v1251
    %v1276 = vmul.f32 %v1252, %v1252
    %v1277 = vmul.f32 %v1253, %v1253
    %v1278 = vmul.f32 %v1254, %v1254
    %v1279 = vmul.f32 %v1255, %v1255
    %v1280 = vmul.f32 %v1256, %v1256
    %v1281 = vmul.f32 %v1257, %v1257
    %v1282 = vmul.f32 %v1258, %v1258
    %v1283 = vmul.f32 %v1259, %v1259
    %v1284 = vmul.f32 %v1260, %v1260
    %v1285 = vmul.f32 %v1261, %v1261
    %v1286 = vmul.f32 %v1262, %v1262
    %v1287 = vmul.f32 %v1263, %v1263
    %v1288 = vmul.f32 %v1264, %v1264
    %v1289 = vmul.f32 %v1265, %v1265
    %v1290 = vmul.f32 %v1266, %v1266
    %v1291 = vmul.f32 %v1267, %v1267
    %v1292 = vmul.f32 %v1268, %v1268
    %v1293 = vmul.f32 %v1269, %v1269
    %v1294 = vmul.f32 %v1270, %v1270
    %v1295 = vmul.f32 %v1271, %v1271
    %v1296 = vmul.f32 %v1272, %v1272
    %1321 = vrot.lane.b32.xlu0 %v1273, 96
    %v1322 = vpop.permute.xlu0 %1321
    %1323 = vrot.lane.b32.xlu0 %v1274, 96
    %v1324 = vpop.permute.xlu0 %1323
    %1325 = vrot.lane.b32.xlu0 %v1275, 96
    %v1326 = vpop.permute.xlu0 %1325
    %1327 = vrot.lane.b32.xlu0 %v1276, 96
    %v1328 = vpop.permute.xlu0 %1327
    %1329 = vrot.lane.b32.xlu0 %v1277, 96
    %v1330 = vpop.permute.xlu0 %1329
    %1331 = vrot.lane.b32.xlu0 %v1278, 96
    %v1332 = vpop.permute.xlu0 %1331
    %1333 = vrot.lane.b32.xlu0 %v1279, 96
    %v1334 = vpop.permute.xlu0 %1333
    %1335 = vrot.lane.b32.xlu0 %v1280, 96
    %v1336 = vpop.permute.xlu0 %1335
    %1337 = vrot.lane.b32.xlu0 %v1281, 96
    %v1338 = vpop.permute.xlu0 %1337
    %1339 = vrot.lane.b32.xlu0 %v1282, 96
    %v1340 = vpop.permute.xlu0 %1339
    %1341 = vrot.lane.b32.xlu0 %v1283, 96
    %v1342 = vpop.permute.xlu0 %1341
    %1343 = vrot.lane.b32.xlu0 %v1284, 96
    %v1344 = vpop.permute.xlu0 %1343
    %1345 = vrot.lane.b32.xlu0 %v1285, 96
    %v1346 = vpop.permute.xlu0 %1345
    %1347 = vrot.lane.b32.xlu0 %v1286, 96
    %v1348 = vpop.permute.xlu0 %1347
    %1349 = vrot.lane.b32.xlu0 %v1287, 96
    %v1350 = vpop.permute.xlu0 %1349
    %1351 = vrot.lane.b32.xlu0 %v1288, 96
    %v1352 = vpop.permute.xlu0 %1351
    %1353 = vrot.lane.b32.xlu0 %v1289, 96
    %v1354 = vpop.permute.xlu0 %1353
    %1355 = vrot.lane.b32.xlu0 %v1290, 96
    %v1356 = vpop.permute.xlu0 %1355
    %1357 = vrot.lane.b32.xlu0 %v1291, 96
    %v1358 = vpop.permute.xlu0 %1357
    %1359 = vrot.lane.b32.xlu0 %v1292, 96
    %v1360 = vpop.permute.xlu0 %1359
    %1361 = vrot.lane.b32.xlu0 %v1293, 96
    %v1362 = vpop.permute.xlu0 %1361
    %1363 = vrot.lane.b32.xlu0 %v1294, 96
    %v1364 = vpop.permute.xlu0 %1363
    %1365 = vrot.lane.b32.xlu0 %v1295, 96
    %v1366 = vpop.permute.xlu0 %1365
    %1367 = vrot.lane.b32.xlu0 %v1296, 96
    %v1368 = vpop.permute.xlu0 %1367
    %v1369 = vsel %vm1174, %v1322, %v1324
    %v1370 = vsel %vm1174, %v1326, %v1328
    %v1371 = vsel %vm1174, %v1330, %v1332
    %v1372 = vsel %vm1174, %v1334, %v1336
    %v1373 = vsel %vm1174, %v1338, %v1340
    %v1374 = vsel %vm1174, %v1342, %v1344
    %v1375 = vsel %vm1174, %v1346, %v1348
    %v1376 = vsel %vm1174, %v1350, %v1352
    %v1377 = vsel %vm1174, %v1354, %v1356
    %v1378 = vsel %vm1174, %v1358, %v1360
    %v1379 = vsel %vm1174, %v1362, %v1364
    %v1380 = vsel %vm1174, %v1366, %v1368
    %v1393 = vsel %vm1199, %v1369, 0.0
    %1394 = vadd.xlane.f32.xlu0 %v1393
    %v1395 = vpop.xlane.xlu0 %1394
    %v1396 = vsel %vm1199, %v1370, 0.0
    %1397 = vadd.xlane.f32.xlu0 %v1396
    %v1398 = vpop.xlane.xlu0 %1397
    %v1399 = vsel %vm1199, %v1371, 0.0
    %1400 = vadd.xlane.f32.xlu0 %v1399
    %v1401 = vpop.xlane.xlu0 %1400
    %v1402 = vsel %vm1199, %v1372, 0.0
    %1403 = vadd.xlane.f32.xlu0 %v1402
    %v1404 = vpop.xlane.xlu0 %1403
    %v1405 = vsel %vm1199, %v1373, 0.0
    %1406 = vadd.xlane.f32.xlu0 %v1405
    %v1407 = vpop.xlane.xlu0 %1406
    %v1408 = vsel %vm1199, %v1374, 0.0
    %1409 = vadd.xlane.f32.xlu0 %v1408
    %v1410 = vpop.xlane.xlu0 %1409
    %v1411 = vsel %vm1199, %v1375, 0.0
    %1412 = vadd.xlane.f32.xlu0 %v1411
    %v1413 = vpop.xlane.xlu0 %1412
    %v1414 = vsel %vm1199, %v1376, 0.0
    %1415 = vadd.xlane.f32.xlu0 %v1414
    %v1416 = vpop.xlane.xlu0 %1415
    %v1417 = vsel %vm1199, %v1377, 0.0
    %1418 = vadd.xlane.f32.xlu0 %v1417
    %v1419 = vpop.xlane.xlu0 %1418
    %v1420 = vsel %vm1199, %v1378, 0.0
    %1421 = vadd.xlane.f32.xlu0 %v1420
    %v1422 = vpop.xlane.xlu0 %1421
    %v1423 = vsel %vm1199, %v1379, 0.0
    %1424 = vadd.xlane.f32.xlu0 %v1423
    %v1425 = vpop.xlane.xlu0 %1424
    %v1426 = vsel %vm1199, %v1380, 0.0
    %1427 = vadd.xlane.f32.xlu0 %v1426
    %v1428 = vpop.xlane.xlu0 %1427
    %v1429 = vmul.f32 %v1395, %v1236
    %v1430 = vmul.f32 %v1398, %v1236
    %v1431 = vmul.f32 %v1401, %v1236
    %v1432 = vmul.f32 %v1404, %v1236
    %v1433 = vmul.f32 %v1407, %v1236
    %v1434 = vmul.f32 %v1410, %v1236
    %v1435 = vmul.f32 %v1413, %v1236
    %v1436 = vmul.f32 %v1416, %v1236
    %v1437 = vmul.f32 %v1419, %v1236
    %v1438 = vmul.f32 %v1422, %v1236
    %v1439 = vmul.f32 %v1425, %v1236
    %v1440 = vmul.f32 %v1428, %v1236
    %v1441 = vadd.f32 %v1429, 1e-05
    %v1442 = vadd.f32 %v1430, 1e-05
    %v1443 = vadd.f32 %v1431, 1e-05
    %v1444 = vadd.f32 %v1432, 1e-05
    %v1445 = vadd.f32 %v1433, 1e-05
    %v1446 = vadd.f32 %v1434, 1e-05
    %v1447 = vadd.f32 %v1435, 1e-05
    %v1448 = vadd.f32 %v1436, 1e-05
    %v1449 = vadd.f32 %v1437, 1e-05
    %v1450 = vadd.f32 %v1438, 1e-05
    %v1451 = vadd.f32 %v1439, 1e-05
    %v1452 = vadd.f32 %v1440, 1e-05
    %v1453 = vrsqrt.pop %v1441
    %v1454 = vrsqrt.pop %v1442
    %v1455 = vrsqrt.pop %v1443
    %v1456 = vrsqrt.pop %v1444
    %v1457 = vrsqrt.pop %v1445
    %v1458 = vrsqrt.pop %v1446
    %v1459 = vrsqrt.pop %v1447
    %v1460 = vrsqrt.pop %v1448
    %v1461 = vrsqrt.pop %v1449
    %v1462 = vrsqrt.pop %v1450
    %v1463 = vrsqrt.pop %v1451
    %v1464 = vrsqrt.pop %v1452
    %v1465 = vmul.f32 %v1249, %v1453
    %v1466 = vmul.f32 %v1250, %v1453
    %v1467 = vmul.f32 %v1251, %v1454
    %v1468 = vmul.f32 %v1252, %v1454
    %v1469 = vmul.f32 %v1253, %v1455
    %v1470 = vmul.f32 %v1254, %v1455
    %v1471 = vmul.f32 %v1255, %v1456
    %v1472 = vmul.f32 %v1256, %v1456
    %v1473 = vmul.f32 %v1257, %v1457
    %v1474 = vmul.f32 %v1258, %v1457
    %v1475 = vmul.f32 %v1259, %v1458
    %v1476 = vmul.f32 %v1260, %v1458
    %v1477 = vmul.f32 %v1261, %v1459
    %v1478 = vmul.f32 %v1262, %v1459
    %v1479 = vmul.f32 %v1263, %v1460
    %v1480 = vmul.f32 %v1264, %v1460
    %v1481 = vmul.f32 %v1265, %v1461
    %v1482 = vmul.f32 %v1266, %v1461
    %v1483 = vmul.f32 %v1267, %v1462
    %v1484 = vmul.f32 %v1268, %v1462
    %v1485 = vmul.f32 %v1269, %v1463
    %v1486 = vmul.f32 %v1270, %v1463
    %v1487 = vmul.f32 %v1271, %v1464
    %v1488 = vmul.f32 %v1272, %v1464
    %v1489 = vlaneseq
    %v1490 = vshrl.u32 %v1489, 7
    %v1491 = vsub.s32 1, %v1490
    %v1492 = vrot.slane %v40, %v1491
    %1494 = vrot.lane.b32.xlu0 %v1492, 32
    %v1495 = vpop.permute.xlu0 %1494
    %v1497 = vmul.f32 %v1465, %v1495
    %v1498 = vmul.f32 %v1466, %v1495
    %v1499 = vmul.f32 %v1467, %v1495
    %v1500 = vmul.f32 %v1468, %v1495
    %v1501 = vmul.f32 %v1469, %v1495
    %v1502 = vmul.f32 %v1470, %v1495
    %v1503 = vmul.f32 %v1471, %v1495
    %v1504 = vmul.f32 %v1472, %v1495
    %v1505 = vmul.f32 %v1473, %v1495
    %v1506 = vmul.f32 %v1474, %v1495
    %v1507 = vmul.f32 %v1475, %v1495
    %v1508 = vmul.f32 %v1476, %v1495
    %v1509 = vmul.f32 %v1477, %v1495
    %v1510 = vmul.f32 %v1478, %v1495
    %v1511 = vmul.f32 %v1479, %v1495
    %v1512 = vmul.f32 %v1480, %v1495
    %v1513 = vmul.f32 %v1481, %v1495
    %v1514 = vmul.f32 %v1482, %v1495
    %v1515 = vmul.f32 %v1483, %v1495
    %v1516 = vmul.f32 %v1484, %v1495
    %v1517 = vmul.f32 %v1485, %v1495
    %v1518 = vmul.f32 %v1486, %v1495
    %v1519 = vmul.f32 %v1487, %v1495
    %v1520 = vmul.f32 %v1488, %v1495
    %v1521 = vlaneseq
    %v1522 = vshrl.u32 %v1521, 7
    %v1523 = vsub.s32 2, %v1522
    %v1524 = vrot.slane %v40, %v1523
    %1526 = vrot.lane.b32.xlu0 %v1524, 32
    %v1527 = vpop.permute.xlu0 %1526
    %v1529 = vadd.f32 %v1497, %v1527
    %v1530 = vadd.f32 %v1498, %v1527
    %v1531 = vadd.f32 %v1499, %v1527
    %v1532 = vadd.f32 %v1500, %v1527
    %v1533 = vadd.f32 %v1501, %v1527
    %v1534 = vadd.f32 %v1502, %v1527
    %v1535 = vadd.f32 %v1503, %v1527
    %v1536 = vadd.f32 %v1504, %v1527
    %v1537 = vadd.f32 %v1505, %v1527
    %v1538 = vadd.f32 %v1506, %v1527
    %v1539 = vadd.f32 %v1507, %v1527
    %v1540 = vadd.f32 %v1508, %v1527
    %v1541 = vadd.f32 %v1509, %v1527
    %v1542 = vadd.f32 %v1510, %v1527
    %v1543 = vadd.f32 %v1511, %v1527
    %v1544 = vadd.f32 %v1512, %v1527
    %v1545 = vadd.f32 %v1513, %v1527
    %v1546 = vadd.f32 %v1514, %v1527
    %v1547 = vadd.f32 %v1515, %v1527
    %v1548 = vadd.f32 %v1516, %v1527
    %v1549 = vadd.f32 %v1517, %v1527
    %v1550 = vadd.f32 %v1518, %v1527
    %v1551 = vadd.f32 %v1519, %v1527
    %v1552 = vadd.f32 %v1520, %v1527
    %v1553 = vtanh.pop %v1529
    %v1554 = vtanh.pop %v1530
    %v1555 = vtanh.pop %v1531
    %v1556 = vtanh.pop %v1532
    %v1557 = vtanh.pop %v1533
    %v1558 = vtanh.pop %v1534
    %v1559 = vtanh.pop %v1535
    %v1560 = vtanh.pop %v1536
    %v1561 = vtanh.pop %v1537
    %v1562 = vtanh.pop %v1538
    %v1563 = vtanh.pop %v1539
    %v1564 = vtanh.pop %v1540
    %v1565 = vtanh.pop %v1541
    %v1566 = vtanh.pop %v1542
    %v1567 = vtanh.pop %v1543
    %v1568 = vtanh.pop %v1544
    %v1569 = vtanh.pop %v1545
    %v1570 = vtanh.pop %v1546
    %v1571 = vtanh.pop %v1547
    %v1572 = vtanh.pop %v1548
    %v1573 = vtanh.pop %v1549
    %v1574 = vtanh.pop %v1550
    %v1575 = vtanh.pop %v1551
    %v1576 = vtanh.pop %v1552
    %v1577 = vlaneseq
    %v1578 = vshrl.u32 %v1577, 7
    %v1579 = vsub.s32 3, %v1578
    %v1580 = vrot.slane %v40, %v1579
    %1582 = vrot.lane.b32.xlu0 %v1580, 32
    %v1583 = vpop.permute.xlu0 %1582
    %v1585 = vmul.f32 %v1553, %v1583
    %v1586 = vmul.f32 %v1554, %v1583
    %v1587 = vmul.f32 %v1555, %v1583
    %v1588 = vmul.f32 %v1556, %v1583
    %v1589 = vmul.f32 %v1557, %v1583
    %v1590 = vmul.f32 %v1558, %v1583
    %v1591 = vmul.f32 %v1559, %v1583
    %v1592 = vmul.f32 %v1560, %v1583
    %v1593 = vmul.f32 %v1561, %v1583
    %v1594 = vmul.f32 %v1562, %v1583
    %v1595 = vmul.f32 %v1563, %v1583
    %v1596 = vmul.f32 %v1564, %v1583
    %v1597 = vmul.f32 %v1565, %v1583
    %v1598 = vmul.f32 %v1566, %v1583
    %v1599 = vmul.f32 %v1567, %v1583
    %v1600 = vmul.f32 %v1568, %v1583
    %v1601 = vmul.f32 %v1569, %v1583
    %v1602 = vmul.f32 %v1570, %v1583
    %v1603 = vmul.f32 %v1571, %v1583
    %v1604 = vmul.f32 %v1572, %v1583
    %v1605 = vmul.f32 %v1573, %v1583
    %v1606 = vmul.f32 %v1574, %v1583
    %v1607 = vmul.f32 %v1575, %v1583
    %v1608 = vmul.f32 %v1576, %v1583
    %1633 = vrot.lane.b32.xlu0 %v1585, 96
    %v1634 = vpop.permute.xlu0 %1633
    %1635 = vrot.lane.b32.xlu0 %v1586, 96
    %v1636 = vpop.permute.xlu0 %1635
    %1637 = vrot.lane.b32.xlu0 %v1587, 96
    %v1638 = vpop.permute.xlu0 %1637
    %1639 = vrot.lane.b32.xlu0 %v1588, 96
    %v1640 = vpop.permute.xlu0 %1639
    %1641 = vrot.lane.b32.xlu0 %v1589, 96
    %v1642 = vpop.permute.xlu0 %1641
    %1643 = vrot.lane.b32.xlu0 %v1590, 96
    %v1644 = vpop.permute.xlu0 %1643
    %1645 = vrot.lane.b32.xlu0 %v1591, 96
    %v1646 = vpop.permute.xlu0 %1645
    %1647 = vrot.lane.b32.xlu0 %v1592, 96
    %v1648 = vpop.permute.xlu0 %1647
    %1649 = vrot.lane.b32.xlu0 %v1593, 96
    %v1650 = vpop.permute.xlu0 %1649
    %1651 = vrot.lane.b32.xlu0 %v1594, 96
    %v1652 = vpop.permute.xlu0 %1651
    %1653 = vrot.lane.b32.xlu0 %v1595, 96
    %v1654 = vpop.permute.xlu0 %1653
    %1655 = vrot.lane.b32.xlu0 %v1596, 96
    %v1656 = vpop.permute.xlu0 %1655
    %1657 = vrot.lane.b32.xlu0 %v1597, 96
    %v1658 = vpop.permute.xlu0 %1657
    %1659 = vrot.lane.b32.xlu0 %v1598, 96
    %v1660 = vpop.permute.xlu0 %1659
    %1661 = vrot.lane.b32.xlu0 %v1599, 96
    %v1662 = vpop.permute.xlu0 %1661
    %1663 = vrot.lane.b32.xlu0 %v1600, 96
    %v1664 = vpop.permute.xlu0 %1663
    %1665 = vrot.lane.b32.xlu0 %v1601, 96
    %v1666 = vpop.permute.xlu0 %1665
    %1667 = vrot.lane.b32.xlu0 %v1602, 96
    %v1668 = vpop.permute.xlu0 %1667
    %1669 = vrot.lane.b32.xlu0 %v1603, 96
    %v1670 = vpop.permute.xlu0 %1669
    %1671 = vrot.lane.b32.xlu0 %v1604, 96
    %v1672 = vpop.permute.xlu0 %1671
    %1673 = vrot.lane.b32.xlu0 %v1605, 96
    %v1674 = vpop.permute.xlu0 %1673
    %1675 = vrot.lane.b32.xlu0 %v1606, 96
    %v1676 = vpop.permute.xlu0 %1675
    %1677 = vrot.lane.b32.xlu0 %v1607, 96
    %v1678 = vpop.permute.xlu0 %1677
    %1679 = vrot.lane.b32.xlu0 %v1608, 96
    %v1680 = vpop.permute.xlu0 %1679
    %v1681 = vsel %vm1174, %v1634, %v1636
    %v1682 = vsel %vm1174, %v1638, %v1640
    %v1683 = vsel %vm1174, %v1642, %v1644
    %v1684 = vsel %vm1174, %v1646, %v1648
    %v1685 = vsel %vm1174, %v1650, %v1652
    %v1686 = vsel %vm1174, %v1654, %v1656
    %v1687 = vsel %vm1174, %v1658, %v1660
    %v1688 = vsel %vm1174, %v1662, %v1664
    %v1689 = vsel %vm1174, %v1666, %v1668
    %v1690 = vsel %vm1174, %v1670, %v1672
    %v1691 = vsel %vm1174, %v1674, %v1676
    %v1692 = vsel %vm1174, %v1678, %v1680
    %v1705 = vsel %vm1199, %v1681, 0.0
    %1706 = vadd.xlane.f32.xlu0 %v1705
    %v1707 = vpop.xlane.xlu0 %1706
    %v1708 = vsel %vm1199, %v1682, 0.0
    %1709 = vadd.xlane.f32.xlu0 %v1708
    %v1710 = vpop.xlane.xlu0 %1709
    %v1711 = vsel %vm1199, %v1683, 0.0
    %1712 = vadd.xlane.f32.xlu0 %v1711
    %v1713 = vpop.xlane.xlu0 %1712
    %v1714 = vsel %vm1199, %v1684, 0.0
    %1715 = vadd.xlane.f32.xlu0 %v1714
    %v1716 = vpop.xlane.xlu0 %1715
    %v1717 = vsel %vm1199, %v1685, 0.0
    %1718 = vadd.xlane.f32.xlu0 %v1717
    %v1719 = vpop.xlane.xlu0 %1718
    %v1720 = vsel %vm1199, %v1686, 0.0
    %1721 = vadd.xlane.f32.xlu0 %v1720
    %v1722 = vpop.xlane.xlu0 %1721
    %v1723 = vsel %vm1199, %v1687, 0.0
    %1724 = vadd.xlane.f32.xlu0 %v1723
    %v1725 = vpop.xlane.xlu0 %1724
    %v1726 = vsel %vm1199, %v1688, 0.0
    %1727 = vadd.xlane.f32.xlu0 %v1726
    %v1728 = vpop.xlane.xlu0 %1727
    %v1729 = vsel %vm1199, %v1689, 0.0
    %1730 = vadd.xlane.f32.xlu0 %v1729
    %v1731 = vpop.xlane.xlu0 %1730
    %v1732 = vsel %vm1199, %v1690, 0.0
    %1733 = vadd.xlane.f32.xlu0 %v1732
    %v1734 = vpop.xlane.xlu0 %1733
    %v1735 = vsel %vm1199, %v1691, 0.0
    %1736 = vadd.xlane.f32.xlu0 %v1735
    %v1737 = vpop.xlane.xlu0 %1736
    %v1738 = vsel %vm1199, %v1692, 0.0
    %1739 = vadd.xlane.f32.xlu0 %v1738
    %v1740 = vpop.xlane.xlu0 %1739
    %v1742 = vlaneseq
    %v1743 = vshrl.u32 %v1742, 7
    %v1744 = vsub.s32 0, %v1743
    %v1745 = vrot.slane %v41, %v1744
    %v1747 = vadd.f32 %v1707, %v1745
    %v1748 = vadd.f32 %v1710, %v1745
    %v1749 = vadd.f32 %v1713, %v1745
    %v1750 = vadd.f32 %v1716, %v1745
    %v1751 = vadd.f32 %v1719, %v1745
    %v1752 = vadd.f32 %v1722, %v1745
    %v1753 = vadd.f32 %v1725, %v1745
    %v1754 = vadd.f32 %v1728, %v1745
    %v1755 = vadd.f32 %v1731, %v1745
    %v1756 = vadd.f32 %v1734, %v1745
    %v1757 = vadd.f32 %v1737, %v1745
    %v1758 = vadd.f32 %v1740, %v1745
    %v1759 = vxor.u32 %v1747, 2147483648
    %v1760 = vxor.u32 %v1748, 2147483648
    %v1761 = vxor.u32 %v1749, 2147483648
    %v1762 = vxor.u32 %v1750, 2147483648
    %v1763 = vxor.u32 %v1751, 2147483648
    %v1764 = vxor.u32 %v1752, 2147483648
    %v1765 = vxor.u32 %v1753, 2147483648
    %v1766 = vxor.u32 %v1754, 2147483648
    %v1767 = vxor.u32 %v1755, 2147483648
    %v1768 = vxor.u32 %v1756, 2147483648
    %v1769 = vxor.u32 %v1757, 2147483648
    %v1770 = vxor.u32 %v1758, 2147483648
    %v1771 = vmul.f32 %v1759, 1.442695
    %v1772 = vpow.pop %v1771
    %v1773 = vmul.f32 %v1760, 1.442695
    %v1774 = vpow.pop %v1773
    %v1775 = vmul.f32 %v1761, 1.442695
    %v1776 = vpow.pop %v1775
    %v1777 = vmul.f32 %v1762, 1.442695
    %v1778 = vpow.pop %v1777
    %v1779 = vmul.f32 %v1763, 1.442695
    %v1780 = vpow.pop %v1779
    %v1781 = vmul.f32 %v1764, 1.442695
    %v1782 = vpow.pop %v1781
    %v1783 = vmul.f32 %v1765, 1.442695
    %v1784 = vpow.pop %v1783
    %v1785 = vmul.f32 %v1766, 1.442695
    %v1786 = vpow.pop %v1785
    %v1787 = vmul.f32 %v1767, 1.442695
    %v1788 = vpow.pop %v1787
    %v1789 = vmul.f32 %v1768, 1.442695
    %v1790 = vpow.pop %v1789
    %v1791 = vmul.f32 %v1769, 1.442695
    %v1792 = vpow.pop %v1791
    %v1793 = vmul.f32 %v1770, 1.442695
    %v1794 = vpow.pop %v1793
    %v1795 = vadd.f32 %v1772, 1.0
    %v1796 = vadd.f32 %v1774, 1.0
    %v1797 = vadd.f32 %v1776, 1.0
    %v1798 = vadd.f32 %v1778, 1.0
    %v1799 = vadd.f32 %v1780, 1.0
    %v1800 = vadd.f32 %v1782, 1.0
    %v1801 = vadd.f32 %v1784, 1.0
    %v1802 = vadd.f32 %v1786, 1.0
    %v1803 = vadd.f32 %v1788, 1.0
    %v1804 = vadd.f32 %v1790, 1.0
    %v1805 = vadd.f32 %v1792, 1.0
    %v1806 = vadd.f32 %v1794, 1.0
    %v1807 = vrcp.pop %v1795
    %v1808 = vmul.f32 1.0, %v1807
    %v1809 = vrcp.pop %v1796
    %v1810 = vmul.f32 1.0, %v1809
    %v1811 = vrcp.pop %v1797
    %v1812 = vmul.f32 1.0, %v1811
    %v1813 = vrcp.pop %v1798
    %v1814 = vmul.f32 1.0, %v1813
    %v1815 = vrcp.pop %v1799
    %v1816 = vmul.f32 1.0, %v1815
    %v1817 = vrcp.pop %v1800
    %v1818 = vmul.f32 1.0, %v1817
    %v1819 = vrcp.pop %v1801
    %v1820 = vmul.f32 1.0, %v1819
    %v1821 = vrcp.pop %v1802
    %v1822 = vmul.f32 1.0, %v1821
    %v1823 = vrcp.pop %v1803
    %v1824 = vmul.f32 1.0, %v1823
    %v1825 = vrcp.pop %v1804
    %v1826 = vmul.f32 1.0, %v1825
    %v1827 = vrcp.pop %v1805
    %v1828 = vmul.f32 1.0, %v1827
    %v1829 = vrcp.pop %v1806
    %v1830 = vmul.f32 1.0, %v1829
    %1832 = vset.pattern.permute.xlu0 0
    %1833 = vperm.xlu0 %1832, %v1808
    %v1834 = vpop.permute.xlu0 %1833
    %1837 = vset.pattern.permute.xlu0 0
    %1838 = vperm.xlu0 %1837, %v1810
    %v1839 = vpop.permute.xlu0 %1838
    %1842 = vset.pattern.permute.xlu0 0
    %1843 = vperm.xlu0 %1842, %v1812
    %v1844 = vpop.permute.xlu0 %1843
    %1847 = vset.pattern.permute.xlu0 0
    %1848 = vperm.xlu0 %1847, %v1814
    %v1849 = vpop.permute.xlu0 %1848
    %1852 = vset.pattern.permute.xlu0 0
    %1853 = vperm.xlu0 %1852, %v1816
    %v1854 = vpop.permute.xlu0 %1853
    %1857 = vset.pattern.permute.xlu0 0
    %1858 = vperm.xlu0 %1857, %v1818
    %v1859 = vpop.permute.xlu0 %1858
    %1862 = vset.pattern.permute.xlu0 0
    %1863 = vperm.xlu0 %1862, %v1820
    %v1864 = vpop.permute.xlu0 %1863
    %1867 = vset.pattern.permute.xlu0 0
    %1868 = vperm.xlu0 %1867, %v1822
    %v1869 = vpop.permute.xlu0 %1868
    %1872 = vset.pattern.permute.xlu0 0
    %1873 = vperm.xlu0 %1872, %v1824
    %v1874 = vpop.permute.xlu0 %1873
    %1877 = vset.pattern.permute.xlu0 0
    %1878 = vperm.xlu0 %1877, %v1826
    %v1879 = vpop.permute.xlu0 %1878
    %1882 = vset.pattern.permute.xlu0 0
    %1883 = vperm.xlu0 %1882, %v1828
    %v1884 = vpop.permute.xlu0 %1883
    %1887 = vset.pattern.permute.xlu0 0
    %1888 = vperm.xlu0 %1887, %v1830
    %v1889 = vpop.permute.xlu0 %1888
    %v1891 = vmul.f32 %v1058, %v1834
    %v1892 = vmul.f32 %v1059, %v1839
    %v1893 = vmul.f32 %v1060, %v1844
    %v1894 = vmul.f32 %v1061, %v1849
    %v1895 = vmul.f32 %v1062, %v1854
    %v1896 = vmul.f32 %v1063, %v1859
    %v1897 = vmul.f32 %v1064, %v1864
    %v1898 = vmul.f32 %v1065, %v1869
    %v1899 = vmul.f32 %v1066, %v1874
    %v1900 = vmul.f32 %v1067, %v1879
    %v1901 = vmul.f32 %v1068, %v1884
    %v1902 = vmul.f32 %v1069, %v1889
    %v1903 = vadd.f32 %v1891, %v1895
    %v1904 = vadd.f32 %v1892, %v1896
    %v1905 = vadd.f32 %v1893, %v1897
    %v1906 = vadd.f32 %v1894, %v1898
    %v1907 = vadd.f32 %v1903, %v1899
    %v1908 = vadd.f32 %v1904, %v1900
    %v1909 = vadd.f32 %v1905, %v1901
    %v1910 = vadd.f32 %v1906, %v1902
    %v1911 = vld [vmem:[%s5] sm:$0xff]
    %v1912 = vld [vmem:[%s5 + $0x8] sm:$0xff]
    %v1913 = vld [vmem:[%s5 + $0x10] sm:$0xff]
    %v1914 = vld [vmem:[%s5 + $0x18] sm:$0xff]
    %v1916 = vsel %vm63, %v1907, 0
    %v1919 = vsel %vm63, %v1908, 0
    %v1922 = vsel %vm63, %v1909, 0
    %v1925 = vsel %vm63, %v1910, 0
    %1927 = vmatprep.subr.mxu0 0.0
    %1928 = vmatpush1.msra.mxu0 %v1911
    %1929 = vmatprep.subr.mxu0 0.0
    %1930 = vmatpush1.msra.mxu0 %v1912
    %1931 = vmatprep.subr.mxu0 0.0
    %1932 = vmatpush1.msra.mxu0 %v1913
    %1933 = vmatprep.subr.mxu0 0.0
    %1934 = vmatpush1.msra.mxu0 %v1914
    %1935 = vmatprep.subr.mxu0 0.0
    %1936 = vmatpush1.msra.mxu0 0.0
    %1937 = vmatprep.subr.mxu0 0.0
    %1938 = vmatpush1.msra.mxu0 0.0
    %1939 = vmatprep.subr.mxu0 0.0
    %1940 = vmatpush1.msra.mxu0 0.0
    %1941 = vmatprep.subr.mxu0 0.0
    %1942 = vmatpush1.msra.mxu0 0.0
    %1943 = vmatprep.subr.mxu0 0.0
    %1944 = vmatpush1.msra.mxu0 0.0
    %1945 = vmatprep.subr.mxu0 0.0
    %1946 = vmatpush1.msra.mxu0 0.0
    %1947 = vmatprep.subr.mxu0 0.0
    %1948 = vmatpush1.msra.mxu0 0.0
    %1949 = vmatprep.subr.mxu0 0.0
    %1950 = vmatpush1.msra.mxu0 0.0
    %1951 = vmatprep.subr.mxu0 0.0
    %1952 = vmatpush1.msra.mxu0 0.0
    %1953 = vmatprep.subr.mxu0 0.0
    %1954 = vmatpush1.msra.mxu0 0.0
    %1955 = vmatprep.subr.mxu0 0.0
    %1956 = vmatpush1.msra.mxu0 0.0
    %1957 = vmatprep.subr.mxu0 0.0
    %1958 = vmatpush1.msra.mxu0 0.0
    %1959 = vmatprep.subr.mxu0 0.0
    %1960 = vmatpush1.msra.mxu0 0.0
    %1961 = vmatprep.subr.mxu0 0.0
    %1962 = vmatpush1.msra.mxu0 0.0
    %1963 = vmatprep.subr.mxu0 0.0
    %1964 = vmatpush1.msra.mxu0 0.0
    %1965 = vmatprep.subr.mxu0 0.0
    %1966 = vmatpush1.msra.mxu0 0.0
    %1967 = vmatprep.subr.mxu0 0.0
    %1968 = vmatpush1.msra.mxu0 0.0
    %1969 = vmatprep.subr.mxu0 0.0
    %1970 = vmatpush1.msra.mxu0 0.0
    %1971 = vmatprep.subr.mxu0 0.0
    %1972 = vmatpush1.msra.mxu0 0.0
    %1973 = vmatprep.subr.mxu0 0.0
    %1974 = vmatpush1.msra.mxu0 0.0
    %1975 = vmatprep.subr.mxu0 0.0
    %1976 = vmatpush1.msra.mxu0 0.0
    %1977 = vmatprep.subr.mxu0 0.0
    %1978 = vmatpush1.msra.mxu0 0.0
    %1979 = vmatprep.subr.mxu0 0.0
    %1980 = vmatpush1.msra.mxu0 0.0
    %1981 = vmatprep.subr.mxu0 0.0
    %1982 = vmatpush1.msra.mxu0 0.0
    %1983 = vmatprep.subr.mxu0 0.0
    %1984 = vmatpush1.msra.mxu0 0.0
    %1985 = vmatprep.subr.mxu0 0.0
    %1986 = vmatpush1.msra.mxu0 0.0
    %1987 = vmatprep.subr.mxu0 0.0
    %1988 = vmatpush1.msra.mxu0 0.0
    %1989 = vmatprep.subr.mxu0 0.0
    %1990 = vmatpush1.msra.mxu0 0.0
    %1991 = vmatprep.mubr.f32.mxu0 0.0
    %1992 = vmatmul.mubr.f32.gmra.mrb[0].mxu0 %v1916
    %v1993 = vpop.f32.mrb[0].mxu0
    %v1994 = vadd.f32 0.0, %v1993
    %v1995 = vpop.f32.mrb[0].mxu0
    %1996 = vmatprep.mubr.f32.mxu0 0.0
    %1997 = vmatmul.mubr.f32.gmra.mrb[0].mxu0 %v1919
    %v1998 = vpop.f32.mrb[0].mxu0
    %v1999 = vadd.f32 0.0, %v1998
    %v2000 = vpop.f32.mrb[0].mxu0
    %2001 = vmatprep.mubr.f32.mxu0 0.0
    %2002 = vmatmul.mubr.f32.gmra.mrb[0].mxu0 %v1922
    %v2003 = vpop.f32.mrb[0].mxu0
    %v2004 = vadd.f32 0.0, %v2003
    %v2005 = vpop.f32.mrb[0].mxu0
    %2006 = vmatprep.mubr.f32.mxu0 0.0
    %2007 = vmatmul.mubr.f32.gmra.mrb[0].mxu0 %v1925
    %v2008 = vpop.f32.mrb[0].mxu0
    %v2009 = vadd.f32 0.0, %v2008
    %v2010 = vpop.f32.mrb[0].mxu0
    %2011 = vdwg.mxu0
    %2016 = vrot.lane.b32.xlu0 %v1994, 64
    %v2017 = vpop.permute.xlu0 %2016
    %2018 = vrot.lane.b32.xlu0 %v1999, 64
    %v2019 = vpop.permute.xlu0 %2018
    %2020 = vrot.lane.b32.xlu0 %v2004, 64
    %v2021 = vpop.permute.xlu0 %2020
    %2022 = vrot.lane.b32.xlu0 %v2009, 64
    %v2023 = vpop.permute.xlu0 %2022
    %v2028 = vadd.f32 %v317, %v2017
    %v2029 = vadd.f32 %v322, %v2019
    %v2030 = vadd.f32 %v327, %v2021
    %v2031 = vadd.f32 %v332, %v2023
    %v2032 = vld [vmem:[%s0] sm:$0xff]
    %v2033 = vld [vmem:[%s0 + $0x8] sm:$0xff]
    %v2034 = vld [vmem:[%s0 + $0x10] sm:$0xff]
    %v2035 = vld [vmem:[%s0 + $0x18] sm:$0xff]
    %v2036 = vld [vmem:[%s0 + $0x20] sm:$0xff]
    %v2037 = vld [vmem:[%s0 + $0x28] sm:$0xff]
    %v2038 = vld [vmem:[%s0 + $0x30] sm:$0xff]
    %v2039 = vld [vmem:[%s0 + $0x38] sm:$0xff]
    %v2040 = vld [vmem:[%s0 + $0x40] sm:$0xff]
    %v2041 = vld [vmem:[%s0 + $0x48] sm:$0xff]
    %v2042 = vld [vmem:[%s0 + $0x50] sm:$0xff]
    %v2043 = vld [vmem:[%s0 + $0x58] sm:$0xff]
    %v2044 = vld [vmem:[%s0 + $0x60] sm:$0xff]
    %v2045 = vld [vmem:[%s0 + $0x68] sm:$0xff]
    %v2046 = vld [vmem:[%s0 + $0x70] sm:$0xff]
    %v2047 = vld [vmem:[%s0 + $0x78] sm:$0xff]
    %v2048 = vld [vmem:[%s6] sm:$0xff]
    %v2049 = vld [vmem:[%s6 + $0x8] sm:$0xff]
    %v2050 = vld [vmem:[%s6 + $0x10] sm:$0xff]
    %v2051 = vld [vmem:[%s6 + $0x18] sm:$0xff]
    %v2052 = vld [vmem:[%s6 + $0x20] sm:$0xff]
    %v2053 = vld [vmem:[%s6 + $0x28] sm:$0xff]
    %v2054 = vld [vmem:[%s6 + $0x30] sm:$0xff]
    %v2055 = vld [vmem:[%s6 + $0x38] sm:$0xff]
    %v2056 = vld [vmem:[%s6 + $0x40] sm:$0xff]
    %v2057 = vld [vmem:[%s6 + $0x48] sm:$0xff]
    %v2058 = vld [vmem:[%s6 + $0x50] sm:$0xff]
    %v2059 = vld [vmem:[%s6 + $0x58] sm:$0xff]
    %v2060 = vld [vmem:[%s6 + $0x60] sm:$0xff]
    %v2061 = vld [vmem:[%s6 + $0x68] sm:$0xff]
    %v2062 = vld [vmem:[%s6 + $0x70] sm:$0xff]
    %v2063 = vld [vmem:[%s6 + $0x78] sm:$0xff]
    %v2064 = vld [vmem:[%s6 + $0x80] sm:$0xff]
    %v2065 = vld [vmem:[%s6 + $0x88] sm:$0xff]
    %v2066 = vld [vmem:[%s6 + $0x90] sm:$0xff]
    %v2067 = vld [vmem:[%s6 + $0x98] sm:$0xff]
    %v2068 = vld [vmem:[%s6 + $0xa0] sm:$0xff]
    %v2069 = vld [vmem:[%s6 + $0xa8] sm:$0xff]
    %v2070 = vld [vmem:[%s6 + $0xb0] sm:$0xff]
    %v2071 = vld [vmem:[%s6 + $0xb8] sm:$0xff]
    %v2072 = vld [vmem:[%s6 + $0xc0] sm:$0xff]
    %v2073 = vld [vmem:[%s6 + $0xc8] sm:$0xff]
    %v2074 = vld [vmem:[%s6 + $0xd0] sm:$0xff]
    %v2075 = vld [vmem:[%s6 + $0xd8] sm:$0xff]
    %v2076 = vld [vmem:[%s6 + $0xe0] sm:$0xff]
    %v2077 = vld [vmem:[%s6 + $0xe8] sm:$0xff]
    %v2078 = vld [vmem:[%s6 + $0xf0] sm:$0xff]
    %v2079 = vld [vmem:[%s6 + $0xf8] sm:$0xff]
    %v2080 = vld [vmem:[%s6 + $0x100] sm:$0xff]
    %v2081 = vld [vmem:[%s6 + $0x108] sm:$0xff]
    %v2082 = vld [vmem:[%s6 + $0x110] sm:$0xff]
    %v2083 = vld [vmem:[%s6 + $0x118] sm:$0xff]
    %v2084 = vld [vmem:[%s6 + $0x120] sm:$0xff]
    %v2085 = vld [vmem:[%s6 + $0x128] sm:$0xff]
    %v2086 = vld [vmem:[%s6 + $0x130] sm:$0xff]
    %v2087 = vld [vmem:[%s6 + $0x138] sm:$0xff]
    %v2088 = vld [vmem:[%s6 + $0x140] sm:$0xff]
    %v2089 = vld [vmem:[%s6 + $0x148] sm:$0xff]
    %v2090 = vld [vmem:[%s6 + $0x150] sm:$0xff]
    %v2091 = vld [vmem:[%s6 + $0x158] sm:$0xff]
    %v2092 = vld [vmem:[%s6 + $0x160] sm:$0xff]
    %v2093 = vld [vmem:[%s6 + $0x168] sm:$0xff]
    %v2094 = vld [vmem:[%s6 + $0x170] sm:$0xff]
    %v2095 = vld [vmem:[%s6 + $0x178] sm:$0xff]
    %v2096 = vld [vmem:[%s6 + $0x180] sm:$0xff]
    %v2097 = vld [vmem:[%s6 + $0x188] sm:$0xff]
    %v2098 = vld [vmem:[%s6 + $0x190] sm:$0xff]
    %v2099 = vld [vmem:[%s6 + $0x198] sm:$0xff]
    %v2100 = vld [vmem:[%s6 + $0x1a0] sm:$0xff]
    %v2101 = vld [vmem:[%s6 + $0x1a8] sm:$0xff]
    %v2102 = vld [vmem:[%s6 + $0x1b0] sm:$0xff]
    %v2103 = vld [vmem:[%s6 + $0x1b8] sm:$0xff]
    %v2104 = vld [vmem:[%s6 + $0x1c0] sm:$0xff]
    %v2105 = vld [vmem:[%s6 + $0x1c8] sm:$0xff]
    %v2106 = vld [vmem:[%s6 + $0x1d0] sm:$0xff]
    %v2107 = vld [vmem:[%s6 + $0x1d8] sm:$0xff]
    %v2108 = vld [vmem:[%s6 + $0x1e0] sm:$0xff]
    %v2109 = vld [vmem:[%s6 + $0x1e8] sm:$0xff]
    %v2110 = vld [vmem:[%s6 + $0x1f0] sm:$0xff]
    %v2111 = vld [vmem:[%s6 + $0x1f8] sm:$0xff]
    %2112 = vmatprep.subr.mxu0 0.0
    %2113 = vmatpush1.msra.mxu0 %v2048
    %2114 = vmatprep.subr.mxu0 0.0
    %2115 = vmatpush1.msra.mxu0 %v2049
    %2116 = vmatprep.subr.mxu0 0.0
    %2117 = vmatpush1.msra.mxu0 %v2050
    %2118 = vmatprep.subr.mxu0 0.0
    %2119 = vmatpush1.msra.mxu0 %v2051
    %2120 = vmatprep.subr.mxu0 0.0
    %2121 = vmatpush1.msra.mxu0 %v2052
    %2122 = vmatprep.subr.mxu0 0.0
    %2123 = vmatpush1.msra.mxu0 %v2053
    %2124 = vmatprep.subr.mxu0 0.0
    %2125 = vmatpush1.msra.mxu0 %v2054
    %2126 = vmatprep.subr.mxu0 0.0
    %2127 = vmatpush1.msra.mxu0 %v2055
    %2128 = vmatprep.subr.mxu0 0.0
    %2129 = vmatpush1.msra.mxu0 %v2056
    %2130 = vmatprep.subr.mxu0 0.0
    %2131 = vmatpush1.msra.mxu0 %v2057
    %2132 = vmatprep.subr.mxu0 0.0
    %2133 = vmatpush1.msra.mxu0 %v2058
    %2134 = vmatprep.subr.mxu0 0.0
    %2135 = vmatpush1.msra.mxu0 %v2059
    %2136 = vmatprep.subr.mxu0 0.0
    %2137 = vmatpush1.msra.mxu0 %v2060
    %2138 = vmatprep.subr.mxu0 0.0
    %2139 = vmatpush1.msra.mxu0 %v2061
    %2140 = vmatprep.subr.mxu0 0.0
    %2141 = vmatpush1.msra.mxu0 %v2062
    %2142 = vmatprep.subr.mxu0 0.0
    %2143 = vmatpush1.msra.mxu0 %v2063
    %2144 = vmatprep.subr.mxu0 0.0
    %2145 = vmatpush1.msra.mxu0 %v2064
    %2146 = vmatprep.subr.mxu0 0.0
    %2147 = vmatpush1.msra.mxu0 %v2065
    %2148 = vmatprep.subr.mxu0 0.0
    %2149 = vmatpush1.msra.mxu0 %v2066
    %2150 = vmatprep.subr.mxu0 0.0
    %2151 = vmatpush1.msra.mxu0 %v2067
    %2152 = vmatprep.subr.mxu0 0.0
    %2153 = vmatpush1.msra.mxu0 %v2068
    %2154 = vmatprep.subr.mxu0 0.0
    %2155 = vmatpush1.msra.mxu0 %v2069
    %2156 = vmatprep.subr.mxu0 0.0
    %2157 = vmatpush1.msra.mxu0 %v2070
    %2158 = vmatprep.subr.mxu0 0.0
    %2159 = vmatpush1.msra.mxu0 %v2071
    %2160 = vmatprep.subr.mxu0 0.0
    %2161 = vmatpush1.msra.mxu0 %v2072
    %2162 = vmatprep.subr.mxu0 0.0
    %2163 = vmatpush1.msra.mxu0 %v2073
    %2164 = vmatprep.subr.mxu0 0.0
    %2165 = vmatpush1.msra.mxu0 %v2074
    %2166 = vmatprep.subr.mxu0 0.0
    %2167 = vmatpush1.msra.mxu0 %v2075
    %2168 = vmatprep.subr.mxu0 0.0
    %2169 = vmatpush1.msra.mxu0 %v2076
    %2170 = vmatprep.subr.mxu0 0.0
    %2171 = vmatpush1.msra.mxu0 %v2077
    %2172 = vmatprep.subr.mxu0 0.0
    %2173 = vmatpush1.msra.mxu0 %v2078
    %2174 = vmatprep.subr.mxu0 0.0
    %2175 = vmatpush1.msra.mxu0 %v2079
    %2176 = vmatprep.mubr.f32.mxu0 %v2033
    %2177 = vmatmul.mubr.f32.gmra.mrb[0].mxu0 %v2032
    %v2178 = vpop.f32.mrb[0].mxu0
    %v2179 = vadd.f32 0.0, %v2178
    %v2180 = vpop.f32.mrb[0].mxu0
    %2181 = vmatprep.mubr.f32.mxu0 %v2037
    %2182 = vmatmul.mubr.f32.gmra.mrb[0].mxu0 %v2036
    %v2183 = vpop.f32.mrb[0].mxu0
    %v2184 = vadd.f32 0.0, %v2183
    %v2185 = vpop.f32.mrb[0].mxu0
    %2186 = vmatprep.mubr.f32.mxu0 %v2041
    %2187 = vmatmul.mubr.f32.gmra.mrb[0].mxu0 %v2040
    %v2188 = vpop.f32.mrb[0].mxu0
    %v2189 = vadd.f32 0.0, %v2188
    %v2190 = vpop.f32.mrb[0].mxu0
    %2191 = vmatprep.mubr.f32.mxu0 %v2045
    %2192 = vmatmul.mubr.f32.gmra.mrb[0].mxu0 %v2044
    %v2193 = vpop.f32.mrb[0].mxu0
    %v2194 = vadd.f32 0.0, %v2193
    %v2195 = vpop.f32.mrb[0].mxu0
    %2196 = vdwg.mxu0
    %2197 = vmatprep.subr.mxu0 0.0
    %2198 = vmatpush1.msra.mxu0 %v2080
    %2199 = vmatprep.subr.mxu0 0.0
    %2200 = vmatpush1.msra.mxu0 %v2081
    %2201 = vmatprep.subr.mxu0 0.0
    %2202 = vmatpush1.msra.mxu0 %v2082
    %2203 = vmatprep.subr.mxu0 0.0
    %2204 = vmatpush1.msra.mxu0 %v2083
    %2205 = vmatprep.subr.mxu0 0.0
    %2206 = vmatpush1.msra.mxu0 %v2084
    %2207 = vmatprep.subr.mxu0 0.0
    %2208 = vmatpush1.msra.mxu0 %v2085
    %2209 = vmatprep.subr.mxu0 0.0
    %2210 = vmatpush1.msra.mxu0 %v2086
    %2211 = vmatprep.subr.mxu0 0.0
    %2212 = vmatpush1.msra.mxu0 %v2087
    %2213 = vmatprep.subr.mxu0 0.0
    %2214 = vmatpush1.msra.mxu0 %v2088
    %2215 = vmatprep.subr.mxu0 0.0
    %2216 = vmatpush1.msra.mxu0 %v2089
    %2217 = vmatprep.subr.mxu0 0.0
    %2218 = vmatpush1.msra.mxu0 %v2090
    %2219 = vmatprep.subr.mxu0 0.0
    %2220 = vmatpush1.msra.mxu0 %v2091
    %2221 = vmatprep.subr.mxu0 0.0
    %2222 = vmatpush1.msra.mxu0 %v2092
    %2223 = vmatprep.subr.mxu0 0.0
    %2224 = vmatpush1.msra.mxu0 %v2093
    %2225 = vmatprep.subr.mxu0 0.0
    %2226 = vmatpush1.msra.mxu0 %v2094
    %2227 = vmatprep.subr.mxu0 0.0
    %2228 = vmatpush1.msra.mxu0 %v2095
    %2229 = vmatprep.subr.mxu0 0.0
    %2230 = vmatpush1.msra.mxu0 %v2096
    %2231 = vmatprep.subr.mxu0 0.0
    %2232 = vmatpush1.msra.mxu0 %v2097
    %2233 = vmatprep.subr.mxu0 0.0
    %2234 = vmatpush1.msra.mxu0 %v2098
    %2235 = vmatprep.subr.mxu0 0.0
    %2236 = vmatpush1.msra.mxu0 %v2099
    %2237 = vmatprep.subr.mxu0 0.0
    %2238 = vmatpush1.msra.mxu0 %v2100
    %2239 = vmatprep.subr.mxu0 0.0
    %2240 = vmatpush1.msra.mxu0 %v2101
    %2241 = vmatprep.subr.mxu0 0.0
    %2242 = vmatpush1.msra.mxu0 %v2102
    %2243 = vmatprep.subr.mxu0 0.0
    %2244 = vmatpush1.msra.mxu0 %v2103
    %2245 = vmatprep.subr.mxu0 0.0
    %2246 = vmatpush1.msra.mxu0 %v2104
    %2247 = vmatprep.subr.mxu0 0.0
    %2248 = vmatpush1.msra.mxu0 %v2105
    %2249 = vmatprep.subr.mxu0 0.0
    %2250 = vmatpush1.msra.mxu0 %v2106
    %2251 = vmatprep.subr.mxu0 0.0
    %2252 = vmatpush1.msra.mxu0 %v2107
    %2253 = vmatprep.subr.mxu0 0.0
    %2254 = vmatpush1.msra.mxu0 %v2108
    %2255 = vmatprep.subr.mxu0 0.0
    %2256 = vmatpush1.msra.mxu0 %v2109
    %2257 = vmatprep.subr.mxu0 0.0
    %2258 = vmatpush1.msra.mxu0 %v2110
    %2259 = vmatprep.subr.mxu0 0.0
    %2260 = vmatpush1.msra.mxu0 %v2111
    %2261 = vmatprep.mubr.f32.mxu0 %v2035
    %2262 = vmatmul.mubr.f32.gmra.mrb[0].mxu0 %v2034
    %v2263 = vpop.f32.mrb[0].mxu0
    %v2264 = vadd.f32 %v2179, %v2263
    %v2265 = vpop.f32.mrb[0].mxu0
    %2266 = vmatprep.mubr.f32.mxu0 %v2039
    %2267 = vmatmul.mubr.f32.gmra.mrb[0].mxu0 %v2038
    %v2268 = vpop.f32.mrb[0].mxu0
    %v2269 = vadd.f32 %v2184, %v2268
    %v2270 = vpop.f32.mrb[0].mxu0
    %2271 = vmatprep.mubr.f32.mxu0 %v2043
    %2272 = vmatmul.mubr.f32.gmra.mrb[0].mxu0 %v2042
    %v2273 = vpop.f32.mrb[0].mxu0
    %v2274 = vadd.f32 %v2189, %v2273
    %v2275 = vpop.f32.mrb[0].mxu0
    %2276 = vmatprep.mubr.f32.mxu0 %v2047
    %2277 = vmatmul.mubr.f32.gmra.mrb[0].mxu0 %v2046
    %v2278 = vpop.f32.mrb[0].mxu0
    %v2279 = vadd.f32 %v2194, %v2278
    %v2280 = vpop.f32.mrb[0].mxu0
    %2281 = vdwg.mxu0
    %2286 = vrot.lane.b32.xlu0 %v2264, 64
    %v2287 = vpop.permute.xlu0 %2286
    %2288 = vrot.lane.b32.xlu0 %v2269, 64
    %v2289 = vpop.permute.xlu0 %2288
    %2290 = vrot.lane.b32.xlu0 %v2274, 64
    %v2291 = vpop.permute.xlu0 %2290
    %2292 = vrot.lane.b32.xlu0 %v2279, 64
    %v2293 = vpop.permute.xlu0 %2292
    %v2298 = vadd.f32 %v2028, %v2287
    %v2299 = vadd.f32 %v2029, %v2289
    %v2300 = vadd.f32 %v2030, %v2291
    %v2301 = vadd.f32 %v2031, %v2293
    %v2302 = vlaneseq
    %v2303 = vshrl.u32 %v2302, 7
    %v2304 = vsub.s32 1, %v2303
    %v2305 = vrot.slane %v39, %v2304
    %2307 = vrot.lane.b32.xlu0 %v2305, 64
    %v2308 = vpop.permute.xlu0 %2307
    %v2310 = vadd.f32 %v2298, %v2308
    %v2311 = vadd.f32 %v2299, %v2308
    %v2312 = vadd.f32 %v2300, %v2308
    %v2313 = vadd.f32 %v2301, %v2308
    %2318 = vrot.lane.b32.xlu0 %v2310, 64
    %v2319 = vpop.permute.xlu0 %2318
    %2320 = vrot.lane.b32.xlu0 %v2311, 64
    %v2321 = vpop.permute.xlu0 %2320
    %2322 = vrot.lane.b32.xlu0 %v2312, 64
    %v2323 = vpop.permute.xlu0 %2322
    %2324 = vrot.lane.b32.xlu0 %v2313, 64
    %v2325 = vpop.permute.xlu0 %2324
    %v2330 = vsel %vm63, %v2319, 0.0
    %2331 = vadd.xlane.f32.xlu0 %v2330
    %v2332 = vpop.xlane.xlu0 %2331
    %v2333 = vsel %vm63, %v2321, 0.0
    %2334 = vadd.xlane.f32.xlu0 %v2333
    %v2335 = vpop.xlane.xlu0 %2334
    %v2336 = vsel %vm63, %v2323, 0.0
    %2337 = vadd.xlane.f32.xlu0 %v2336
    %v2338 = vpop.xlane.xlu0 %2337
    %v2339 = vsel %vm63, %v2325, 0.0
    %2340 = vadd.xlane.f32.xlu0 %v2339
    %v2341 = vpop.xlane.xlu0 %2340
    %v2342 = vmul.f32 %v2332, %v173
    %v2343 = vmul.f32 %v2335, %v173
    %v2344 = vmul.f32 %v2338, %v173
    %v2345 = vmul.f32 %v2341, %v173
    %v2346 = vsub.f32 %v2310, %v2342
    %v2347 = vsub.f32 %v2311, %v2343
    %v2348 = vsub.f32 %v2312, %v2344
    %v2349 = vsub.f32 %v2313, %v2345
    %v2350 = vmul.f32 %v2346, %v2346
    %v2351 = vmul.f32 %v2347, %v2347
    %v2352 = vmul.f32 %v2348, %v2348
    %v2353 = vmul.f32 %v2349, %v2349
    %2358 = vrot.lane.b32.xlu0 %v2350, 64
    %v2359 = vpop.permute.xlu0 %2358
    %2360 = vrot.lane.b32.xlu0 %v2351, 64
    %v2361 = vpop.permute.xlu0 %2360
    %2362 = vrot.lane.b32.xlu0 %v2352, 64
    %v2363 = vpop.permute.xlu0 %2362
    %2364 = vrot.lane.b32.xlu0 %v2353, 64
    %v2365 = vpop.permute.xlu0 %2364
    %v2370 = vsel %vm63, %v2359, 0.0
    %2371 = vadd.xlane.f32.xlu0 %v2370
    %v2372 = vpop.xlane.xlu0 %2371
    %v2373 = vsel %vm63, %v2361, 0.0
    %2374 = vadd.xlane.f32.xlu0 %v2373
    %v2375 = vpop.xlane.xlu0 %2374
    %v2376 = vsel %vm63, %v2363, 0.0
    %2377 = vadd.xlane.f32.xlu0 %v2376
    %v2378 = vpop.xlane.xlu0 %2377
    %v2379 = vsel %vm63, %v2365, 0.0
    %2380 = vadd.xlane.f32.xlu0 %v2379
    %v2381 = vpop.xlane.xlu0 %2380
    %v2382 = vmul.f32 %v2372, %v173
    %v2383 = vmul.f32 %v2375, %v173
    %v2384 = vmul.f32 %v2378, %v173
    %v2385 = vmul.f32 %v2381, %v173
    %v2386 = vadd.f32 %v2382, 1e-05
    %v2387 = vadd.f32 %v2383, 1e-05
    %v2388 = vadd.f32 %v2384, 1e-05
    %v2389 = vadd.f32 %v2385, 1e-05
    %v2390 = vrsqrt.pop %v2386
    %v2391 = vrsqrt.pop %v2387
    %v2392 = vrsqrt.pop %v2388
    %v2393 = vrsqrt.pop %v2389
    %v2394 = vmul.f32 %v2346, %v2390
    %v2395 = vmul.f32 %v2347, %v2391
    %v2396 = vmul.f32 %v2348, %v2392
    %v2397 = vmul.f32 %v2349, %v2393
    %v2398 = vxor.u32 %v2394, 2147483648
    %v2399 = vxor.u32 %v2395, 2147483648
    %v2400 = vxor.u32 %v2396, 2147483648
    %v2401 = vxor.u32 %v2397, 2147483648
    %v2402 = vmul.f32 %v2398, 1.442695
    %v2403 = vpow.pop %v2402
    %v2404 = vmul.f32 %v2399, 1.442695
    %v2405 = vpow.pop %v2404
    %v2406 = vmul.f32 %v2400, 1.442695
    %v2407 = vpow.pop %v2406
    %v2408 = vmul.f32 %v2401, 1.442695
    %v2409 = vpow.pop %v2408
    %v2410 = vadd.f32 %v2403, 1.0
    %v2411 = vadd.f32 %v2405, 1.0
    %v2412 = vadd.f32 %v2407, 1.0
    %v2413 = vadd.f32 %v2409, 1.0
    %v2414 = vrcp.pop %v2410
    %v2415 = vmul.f32 1.0, %v2414
    %v2416 = vrcp.pop %v2411
    %v2417 = vmul.f32 1.0, %v2416
    %v2418 = vrcp.pop %v2412
    %v2419 = vmul.f32 1.0, %v2418
    %v2420 = vrcp.pop %v2413
    %v2421 = vmul.f32 1.0, %v2420
    %v2422 = vxor.u32 %v2310, 2147483648
    %v2423 = vxor.u32 %v2311, 2147483648
    %v2424 = vxor.u32 %v2312, 2147483648
    %v2425 = vxor.u32 %v2313, 2147483648
    %v2426 = vmul.f32 %v2422, 1.442695
    %v2427 = vpow.pop %v2426
    %v2428 = vmul.f32 %v2423, 1.442695
    %v2429 = vpow.pop %v2428
    %v2430 = vmul.f32 %v2424, 1.442695
    %v2431 = vpow.pop %v2430
    %v2432 = vmul.f32 %v2425, 1.442695
    %v2433 = vpow.pop %v2432
    %v2434 = vadd.f32 %v2427, 1.0
    %v2435 = vadd.f32 %v2429, 1.0
    %v2436 = vadd.f32 %v2431, 1.0
    %v2437 = vadd.f32 %v2433, 1.0
    %v2438 = vrcp.pop %v2434
    %v2439 = vmul.f32 1.0, %v2438
    %v2440 = vrcp.pop %v2435
    %v2441 = vmul.f32 1.0, %v2440
    %v2442 = vrcp.pop %v2436
    %v2443 = vmul.f32 1.0, %v2442
    %v2444 = vrcp.pop %v2437
    %v2445 = vmul.f32 1.0, %v2444
    %2450 = vrot.lane.b32.xlu0 %v2415, 64
    %v2451 = vpop.permute.xlu0 %2450
    %2452 = vrot.lane.b32.xlu0 %v2417, 64
    %v2453 = vpop.permute.xlu0 %2452
    %2454 = vrot.lane.b32.xlu0 %v2419, 64
    %v2455 = vpop.permute.xlu0 %2454
    %2456 = vrot.lane.b32.xlu0 %v2421, 64
    %v2457 = vpop.permute.xlu0 %2456
    %2466 = vrot.lane.b32.xlu0 %v2439, 96
    %v2467 = vpop.permute.xlu0 %2466
    %2468 = vrot.lane.b32.xlu0 %v2441, 96
    %v2469 = vpop.permute.xlu0 %2468
    %2470 = vrot.lane.b32.xlu0 %v2443, 96
    %v2471 = vpop.permute.xlu0 %2470
    %2472 = vrot.lane.b32.xlu0 %v2445, 96
    %v2473 = vpop.permute.xlu0 %2472
    %v2478 = vsel %vm63, %v2451, %v2467
    %v2479 = vsel %vm63, %v2453, %v2469
    %v2480 = vsel %vm63, %v2455, %v2471
    %v2481 = vsel %vm63, %v2457, %v2473
    %vm2482 = vcmask 523264
    %2483 = vst.msk [vmem:[#allocation3] sm:$0xff] %vm2482, %v2478
    %2484 = vst.msk [vmem:[#allocation3 + $0x8] sm:$0xff] %vm2482, %v2479
    %2485 = vst.msk [vmem:[#allocation3 + $0x10] sm:$0xff] %vm2482, %v2480
    %2486 = vst.msk [vmem:[#allocation3 + $0x18] sm:$0xff] %vm2482, %v2481
    // Predicated region
    $region42: #{tpu_custom_call.1} parent=1 // pred_check
      _
    $region43: #{tpu_custom_call.1} parent=1 // pred_check_branch
      %2488 = sbr.rel (0) target = $region45
    $region44: #{tpu_custom_call.1} parent=1 // pred_region
      %s2490 = ssub.s32 512, 512
      %2491 = vsyncadd [#allocation4], %s2490
      %s2492 = sshll.u32 [#allocation3], 4
      %s2493 = int_to_ptr.vmem [resolvable:$true] %s2492
      %2498 = dma.vmem_to_hbm [thread:$0]  %s2493, 512, %s10, [#allocation4], 128, 128, 8
    $region45: #{tpu_custom_call.1} parent=1 // pred_fallthru
      _
    // Predicated region
    $region46: #{tpu_custom_call.1} parent=1 // pred_check
      _
    $region47: #{tpu_custom_call.1} parent=1 // pred_check_branch
      %2500 = sbr.rel (0) target = $region49
    $region48: #{tpu_custom_call.1} parent=1 // pred_region
      %2501 = dma.done [#allocation4], 512
    $region49: #{tpu_custom_call.1} parent=1 // pred_fallthru
      _
    %2502 = vsyncpa [#allocation4], 1

</llo_original>
